<compile_context>
chip_gen: v6e
topology: v6e:2x2x1
jax: 0.10.0
libtpu: 0.0.40
codegen_flags: <defaults>
</compile_context>

<pallas_src>
import jax
import jax.numpy as jnp
from jax import lax
from jax.experimental import pallas as pl
from jax.experimental.pallas import tpu as pltpu


def _round_up(a: int, m: int) -> int:
    return ((a + m - 1) // m) * m


def _make_mlp_kernel(n_layers: int, lane_dense_out: bool):
    """Fused MLP kernel: all layers + activations computed on one batch tile.

    Hidden layers: h = tanh(h @ W_l + b_l)   (W_l pre-transposed to (in, out)).
    Final layer (lane_dense_out=True): the PyTorch-layout (1, hid) weight is
    contracted against h's feature axis to produce a lane-dense (1, tb) output
    row directly -- no in-kernel transpose, no lane-sparse masked stores.
    """

    def kernel(x_ref, *refs):
        o_ref = refs[-1]
        params = refs[:-1]

        h = x_ref[...]  # already f32; no cast pass
        for layer in range(n_layers - 1):
            w = params[2 * layer][...]          # (in_l, out_l)  pre-transposed
            b = params[2 * layer + 1][...]      # (1, out_l)
            h = jnp.tanh(jnp.dot(h, w, preferred_element_type=jnp.float32) + b)

        w_last = params[2 * (n_layers - 1)][...]
        b_last = params[2 * (n_layers - 1) + 1][...]
        if lane_dense_out:
            # (1, hid) x (tb, hid) -> (1, tb): contract the feature axis of both
            # operands so the single output feature lands on the lane axis.
            y = lax.dot_general(
                w_last, h,
                dimension_numbers=(((1,), (1,)), ((), ())),
                preferred_element_type=jnp.float32,
            ) + b_last                          # (1, tb)
        else:
            y = jnp.dot(h, w_last, preferred_element_type=jnp.float32) + b_last

        o_ref[...] = jax.nn.sigmoid(y).astype(o_ref.dtype)

    return kernel


def mlp_forward(x, weights, biases, *, batch_tile=256):
    """Run the fused MLP Pallas kernel.

    x:        (B, input_neurons) float32
    weights:  list of (out_f, in_f) float32  (PyTorch Linear convention)
    biases:   list of (out_f,)     float32
    returns:  sigmoid(last_linear(...)).squeeze(-1)   (squeeze only if out_f == 1)
    """
    n_layers = len(weights)
    B, in_features = x.shape
    out_features = int(weights[-1].shape[0])
    lane_dense = out_features == 1

    # ---- batch tiling: big tiles amortize per-step overhead & fill the MXU M dim.
    tb = min(batch_tile, _round_up(B, 8))
    if _round_up(B, tb) > tb:
        # More than one grid step: tiled block dims must obey (8, 128) rules.
        tb = _round_up(tb, 128) if lane_dense else _round_up(tb, 8)
    B_pad = _round_up(B, tb)
    grid = (B_pad // tb,)

    x = jnp.asarray(x, jnp.float32)
    if B_pad != B:
        # Masked tail via zero padding: keeps full-size, MXU-filling tiles.
        x = jnp.pad(x, ((0, B_pad - B), (0, 0)))

    # ---- host-side param prep (layout plumbing only).
    wts, bss = [], []
    for li, (w, b) in enumerate(zip(weights, biases)):
        w = jnp.asarray(w, jnp.float32)
        b = jnp.asarray(b, jnp.float32).reshape(1, -1)
        if li == n_layers - 1 and lane_dense:
            wts.append(w)        # keep (1, hid): used as the transposed-RHS matmul lhs
        else:
            wts.append(w.T)      # (in, out) so the kernel does a plain h @ W
        bss.append(b)

    # ---- block specs: x/out tiled over batch; weights/biases fully resident.
    x_spec = pl.BlockSpec((tb, in_features), lambda i: (i, 0))
    const_map = lambda i: (0, 0)
    param_specs = []
    for w, b in zip(wts, bss):
        # NOTE: for large hidden sizes on v7x (64 MiB VMEM), single-buffer these
        # constant-index blocks with pipeline_mode=pl.Buffered(1) to halve their cost.
        param_specs.append(pl.BlockSpec(w.shape, const_map))
        param_specs.append(pl.BlockSpec(b.shape, const_map))

    if lane_dense:
        out_shape = jax.ShapeDtypeStruct((1, B_pad), jnp.float32)
        out_spec = pl.BlockSpec((1, tb), lambda i: (0, i))   # lane-dense row blocks
    else:
        out_shape = jax.ShapeDtypeStruct((B_pad, out_features), jnp.float32)
        out_spec = pl.BlockSpec((tb, out_features), lambda i: (i, 0))

    # ---- advisory cost estimate (helps XLA schedule around the custom call).
    layer_dims = [(int(w.shape[1]), int(w.shape[0])) for w in weights]  # (fan_in, fan_out)
    total_macs = sum(fi * fo for (fi, fo) in layer_dims)
    cost = pl.CostEstimate(
        flops=2 * B_pad * total_macs,
        transcendentals=B_pad * sum(fo for (_, fo) in layer_dims),
        bytes_accessed=4 * (x.size + sum(w.size for w in wts)
                            + sum(b.size for b in bss) + B_pad * out_features),
    )

    # ---- explicit VMEM budget (v7x has only 64 MiB physical / 32 MiB scoped default).
    param_bytes = 4 * (sum(int(w.size) for w in wts) + sum(int(b.size) for b in bss))
    max_width = max([in_features] + [fo for (_, fo) in layer_dims])
    out_tile_bytes = 4 * (tb if lane_dense else tb * out_features)
    est = (2 * param_bytes                  # double-buffered resident params
           + 2 * 4 * tb * in_features       # double-buffered x tile
           + 2 * out_tile_bytes             # double-buffered out tile
           + 8 * 4 * tb * max_width)        # activation working set (generous)
    vmem_limit = int(min(max(2 * est, 8 << 20), 64 << 20))

    kernel = _make_mlp_kernel(n_layers, lane_dense)

    out = pl.pallas_call(
        kernel,
        out_shape=out_shape,
        grid_spec=pltpu.PrefetchScalarGridSpec(
            num_scalar_prefetch=0,
            grid=grid,
            in_specs=[x_spec] + param_specs,
            out_specs=out_spec,
        ),
        compiler_params=pltpu.CompilerParams(
            dimension_semantics=("parallel",),
            vmem_limit_bytes=vmem_limit,
        ),
        cost_estimate=cost,
    )(x, *[p for wb in zip(wts, bss) for p in wb])

    if lane_dense:
        return out[0, :B]        # torch's x.squeeze(-1) -> shape (B,)
    return out[:B]


def init_mlp_params(key, input_neurons, hidden_neurons, output_neurons, hiddenlayers):
    """Deterministic init mimicking nn.Linear's U(-1/sqrt(fan_in), 1/sqrt(fan_in))."""
    layer_dims = [(input_neurons, hidden_neurons)]
    layer_dims += [(hidden_neurons, hidden_neurons) for _ in range(hiddenlayers + 1)]
    layer_dims += [(hidden_neurons, output_neurons)]

    weights, biases = [], []
    for (fan_in, fan_out) in layer_dims:
        key, kw, kb = jax.random.split(key, 3)
        bound = 1.0 / jnp.sqrt(fan_in)
        weights.append(jax.random.uniform(kw, (fan_out, fan_in), jnp.float32, -bound, bound))
        biases.append(jax.random.uniform(kb, (fan_out,), jnp.float32, -bound, bound))
    return weights, biases


def mlp_reference(x, weights, biases):
    """Plain-JAX reference matching the PyTorch forward exactly."""
    h = x
    for w, b in zip(weights[:-1], biases[:-1]):
        h = jnp.tanh(h @ w.T + b)
    h = h @ weights[-1].T + biases[-1]
    if h.shape[-1] == 1:
        h = h[..., 0]
    return jax.nn.sigmoid(h)


if __name__ == "__main__":
    # Small, forward-consistent shapes; batch deliberately not a multiple of the
    # 256-row tile to exercise the padded-tail path and still give >=2 grid steps.
    input_neurons, hidden_neurons, output_neurons, hiddenlayers = 16, 32, 1, 1
    batch = 500

    key = jax.random.PRNGKey(0)
    key, kx = jax.random.split(key)
    x = jax.random.normal(kx, (batch, input_neurons), jnp.float32)

    weights, biases = init_mlp_params(
        key, input_neurons, hidden_neurons, output_neurons, hiddenlayers
    )

    out = mlp_forward(x, weights, biases, batch_tile=256)
    out = jax.block_until_ready(out)

    ref = mlp_reference(x, weights, biases)
    assert out.shape == ref.shape, (out.shape, ref.shape)
    assert jnp.allclose(out, ref, atol=1e-5, rtol=1e-5), "mismatch vs reference"

    print("KERNEL_OK")
</pallas_src>

<mosaic_0001>
module attributes {stable_mosaic.version = 11 : i64} {
  func.func @kernel(%arg0: i32, %arg1: memref<256x16xf32, #tpu.memory_space<vmem>>, %arg2: memref<16x32xf32, #tpu.memory_space<vmem>>, %arg3: memref<1x32xf32, #tpu.memory_space<vmem>>, %arg4: memref<32x32xf32, #tpu.memory_space<vmem>>, %arg5: memref<1x32xf32, #tpu.memory_space<vmem>>, %arg6: memref<32x32xf32, #tpu.memory_space<vmem>>, %arg7: memref<1x32xf32, #tpu.memory_space<vmem>>, %arg8: memref<1x32xf32, #tpu.memory_space<vmem>>, %arg9: memref<1x1xf32, #tpu.memory_space<vmem>>, %arg10: memref<1x256xf32, #tpu.memory_space<vmem>>) attributes {dimension_semantics = [#tpu.dimension_semantics<parallel>], iteration_bounds = array<i64: 2>, scalar_prefetch = 0 : i64, scratch_operands = 0 : i64, tpu.core_type = #tpu.core_type<tc>, window_params = [{transform_indices = @transform_0, window_bounds = array<i64: 256, 16>}, {pipeline_mode = #tpu.pipeline_mode<synchronous>, transform_indices = @transform_1, window_bounds = array<i64: 16, 32>}, {pipeline_mode = #tpu.pipeline_mode<synchronous>, transform_indices = @transform_2, window_bounds = array<i64: 1, 32>}, {pipeline_mode = #tpu.pipeline_mode<synchronous>, transform_indices = @transform_3, window_bounds = array<i64: 32, 32>}, {pipeline_mode = #tpu.pipeline_mode<synchronous>, transform_indices = @transform_4, window_bounds = array<i64: 1, 32>}, {pipeline_mode = #tpu.pipeline_mode<synchronous>, transform_indices = @transform_5, window_bounds = array<i64: 32, 32>}, {pipeline_mode = #tpu.pipeline_mode<synchronous>, transform_indices = @transform_6, window_bounds = array<i64: 1, 32>}, {pipeline_mode = #tpu.pipeline_mode<synchronous>, transform_indices = @transform_7, window_bounds = array<i64: 1, 32>}, {pipeline_mode = #tpu.pipeline_mode<synchronous>, transform_indices = @transform_8, window_bounds = array<i64: 1, 1>}, {transform_indices = @transform_9, window_bounds = array<i64: 1, 256>}]} {
    %c0 = arith.constant 0 : index
    %c0_0 = arith.constant 0 : index
    %0 = vector.load %arg1[%c0, %c0_0] : memref<256x16xf32, #tpu.memory_space<vmem>>, vector<256x16xf32>
    %c0_1 = arith.constant 0 : index
    %c0_2 = arith.constant 0 : index
    %1 = vector.load %arg2[%c0_1, %c0_2] : memref<16x32xf32, #tpu.memory_space<vmem>>, vector<16x32xf32>
    %c0_3 = arith.constant 0 : index
    %c0_4 = arith.constant 0 : index
    %2 = vector.load %arg3[%c0_3, %c0_4] : memref<1x32xf32, #tpu.memory_space<vmem>>, vector<1x32xf32>
    %cst = arith.constant dense<0.000000e+00> : vector<256x32xf32>
    %3 = tpu.matmul %0, %1, %cst {dimension_numbers = #tpu.dot_dimension_numbers<[1], [0], [0], [1], [0, 0, 1, 1], [], []>} : vector<256x16xf32>, vector<16x32xf32>, vector<256x32xf32> -> vector<256x32xf32>
    %4 = vector.broadcast %2 : vector<1x32xf32> to vector<256x32xf32>
    %5 = arith.addf %3, %4 : vector<256x32xf32>
    %6 = math.tanh %5 : vector<256x32xf32>
    %c0_5 = arith.constant 0 : index
    %c0_6 = arith.constant 0 : index
    %7 = vector.load %arg4[%c0_5, %c0_6] : memref<32x32xf32, #tpu.memory_space<vmem>>, vector<32x32xf32>
    %c0_7 = arith.constant 0 : index
    %c0_8 = arith.constant 0 : index
    %8 = vector.load %arg5[%c0_7, %c0_8] : memref<1x32xf32, #tpu.memory_space<vmem>>, vector<1x32xf32>
    %cst_9 = arith.constant dense<0.000000e+00> : vector<256x32xf32>
    %9 = tpu.matmul %6, %7, %cst_9 {dimension_numbers = #tpu.dot_dimension_numbers<[1], [0], [0], [1], [0, 0, 1, 1], [], []>} : vector<256x32xf32>, vector<32x32xf32>, vector<256x32xf32> -> vector<256x32xf32>
    %10 = vector.broadcast %8 : vector<1x32xf32> to vector<256x32xf32>
    %11 = arith.addf %9, %10 : vector<256x32xf32>
    %12 = math.tanh %11 : vector<256x32xf32>
    %c0_10 = arith.constant 0 : index
    %c0_11 = arith.constant 0 : index
    %13 = vector.load %arg6[%c0_10, %c0_11] : memref<32x32xf32, #tpu.memory_space<vmem>>, vector<32x32xf32>
    %c0_12 = arith.constant 0 : index
    %c0_13 = arith.constant 0 : index
    %14 = vector.load %arg7[%c0_12, %c0_13] : memref<1x32xf32, #tpu.memory_space<vmem>>, vector<1x32xf32>
    %cst_14 = arith.constant dense<0.000000e+00> : vector<256x32xf32>
    %15 = tpu.matmul %12, %13, %cst_14 {dimension_numbers = #tpu.dot_dimension_numbers<[1], [0], [0], [1], [0, 0, 1, 1], [], []>} : vector<256x32xf32>, vector<32x32xf32>, vector<256x32xf32> -> vector<256x32xf32>
    %16 = vector.broadcast %14 : vector<1x32xf32> to vector<256x32xf32>
    %17 = arith.addf %15, %16 : vector<256x32xf32>
    %18 = math.tanh %17 : vector<256x32xf32>
    %c0_15 = arith.constant 0 : index
    %c0_16 = arith.constant 0 : index
    %19 = vector.load %arg8[%c0_15, %c0_16] : memref<1x32xf32, #tpu.memory_space<vmem>>, vector<1x32xf32>
    %c0_17 = arith.constant 0 : index
    %c0_18 = arith.constant 0 : index
    %20 = vector.load %arg9[%c0_17, %c0_18] : memref<1x1xf32, #tpu.memory_space<vmem>>, vector<1x1xf32>
    %cst_19 = arith.constant dense<0.000000e+00> : vector<1x256xf32>
    %21 = tpu.matmul %19, %18, %cst_19 {dimension_numbers = #tpu.dot_dimension_numbers<[1], [1], [0], [0], [0, 0, 1, 0], [], []>} : vector<1x32xf32>, vector<256x32xf32>, vector<1x256xf32> -> vector<1x256xf32>
    %22 = vector.broadcast %20 : vector<1x1xf32> to vector<1x256xf32>
    %23 = arith.addf %21, %22 : vector<1x256xf32>
    %24 = arith.negf %23 : vector<1x256xf32>
    %25 = math.exp %24 : vector<1x256xf32>
    %cst_20 = arith.constant 1.000000e+00 : f32
    %26 = vector.broadcast %cst_20 : f32 to vector<1x256xf32>
    %27 = arith.addf %26, %25 : vector<1x256xf32>
    %28 = arith.divf %26, %27 : vector<1x256xf32>
    %c0_21 = arith.constant 0 : index
    %c0_22 = arith.constant 0 : index
    %29 = vector.load %arg10[%c0_21, %c0_22] : memref<1x256xf32, #tpu.memory_space<vmem>>, vector<1x256xf32>
    tpu.vector_store %arg10[%c0_21, %c0_22], %28 {strides = array<i32>} : memref<1x256xf32, #tpu.memory_space<vmem>>, vector<1x256xf32>,
    return
  }
  func.func @transform_0(%arg0: i32) -> (i32, i32) {
    %c0_i32 = arith.constant 0 : i32
    %c0_i32_0 = arith.constant 0 : i32
    return %arg0, %c0_i32 : i32, i32
  }
  func.func @transform_1(%arg0: i32) -> (i32, i32) {
    %c0_i32 = arith.constant 0 : i32
    %c0_i32_0 = arith.constant 0 : i32
    %c0_i32_1 = arith.constant 0 : i32
    return %c0_i32, %c0_i32_0 : i32, i32
  }
  func.func @transform_2(%arg0: i32) -> (i32, i32) {
    %c0_i32 = arith.constant 0 : i32
    %c0_i32_0 = arith.constant 0 : i32
    %c0_i32_1 = arith.constant 0 : i32
    return %c0_i32, %c0_i32_0 : i32, i32
  }
  func.func @transform_3(%arg0: i32) -> (i32, i32) {
    %c0_i32 = arith.constant 0 : i32
    %c0_i32_0 = arith.constant 0 : i32
    %c0_i32_1 = arith.constant 0 : i32
    return %c0_i32, %c0_i32_0 : i32, i32
  }
  func.func @transform_4(%arg0: i32) -> (i32, i32) {
    %c0_i32 = arith.constant 0 : i32
    %c0_i32_0 = arith.constant 0 : i32
    %c0_i32_1 = arith.constant 0 : i32
    return %c0_i32, %c0_i32_0 : i32, i32
  }
  func.func @transform_5(%arg0: i32) -> (i32, i32) {
    %c0_i32 = arith.constant 0 : i32
    %c0_i32_0 = arith.constant 0 : i32
    %c0_i32_1 = arith.constant 0 : i32
    return %c0_i32, %c0_i32_0 : i32, i32
  }
  func.func @transform_6(%arg0: i32) -> (i32, i32) {
    %c0_i32 = arith.constant 0 : i32
    %c0_i32_0 = arith.constant 0 : i32
    %c0_i32_1 = arith.constant 0 : i32
    return %c0_i32, %c0_i32_0 : i32, i32
  }
  func.func @transform_7(%arg0: i32) -> (i32, i32) {
    %c0_i32 = arith.constant 0 : i32
    %c0_i32_0 = arith.constant 0 : i32
    %c0_i32_1 = arith.constant 0 : i32
    return %c0_i32, %c0_i32_0 : i32, i32
  }
  func.func @transform_8(%arg0: i32) -> (i32, i32) {
    %c0_i32 = arith.constant 0 : i32
    %c0_i32_0 = arith.constant 0 : i32
    %c0_i32_1 = arith.constant 0 : i32
    return %c0_i32, %c0_i32_0 : i32, i32
  }
  func.func @transform_9(%arg0: i32) -> (i32, i32) {
    %c0_i32 = arith.constant 0 : i32
    %c0_i32_0 = arith.constant 0 : i32
    return %c0_i32, %arg0 : i32, i32
  }
}

</mosaic_0001>

<llo_original>
// kernel: tpu_custom_call.1
$region0: #{tpu_custom_call.1}
  #allocation0 [shape = 'u32[]', space=smem, size = 0x4, offset = 0x4, fixed_abs, tag = 'smem constant byte address 0x4 - core index']
  #allocation1 [shape = 'u32[144,128]{1,0:T(1,128)}', space=vmem, size = 0x12000, scoped, tag = 'internal scratch']
  #allocation2 [shape = 'f32[1,1]{1,0:T(1,128)S(1)}', space=vmem, size = 0x200, scoped, tag = 'scoped memory for tpu_custom_call.1']
  %s0 = inlined_call_operand.vmem [shape: f32[512,16], index: 0, kind: input, shape index: {}]
  %s1 = inlined_call_operand.vmem [shape: f32[16,32], index: 1, kind: input, shape index: {}]
  %s2 = inlined_call_operand.vmem [shape: f32[1,32], index: 2, kind: input, shape index: {}]
  %s3 = inlined_call_operand.vmem [shape: f32[32,32], index: 3, kind: input, shape index: {}]
  %s4 = inlined_call_operand.vmem [shape: f32[1,32], index: 4, kind: input, shape index: {}]
  %s5 = inlined_call_operand.vmem [shape: f32[32,32], index: 5, kind: input, shape index: {}]
  %s6 = inlined_call_operand.vmem [shape: f32[1,32], index: 6, kind: input, shape index: {}]
  %s7 = inlined_call_operand.vmem [shape: f32[1,32], index: 7, kind: input, shape index: {}]
  %s8 = inlined_call_operand.<no memory space> [shape: f32[1,1], index: 8, kind: input, shape index: {}]
  %s9 = inlined_call_operand.hbm [shape: f32[1,512], index: 9, kind: output, shape index: {}]
  %s10 = sld [smem:[#allocation0]]
  $region69: #{tpu_custom_call.1} parent=0
    _
  %s12 = ssub.s32 1, %s10
  %s13 = scalar_select 0, %s12, %s10
  %v14 = vstv %s8
  %15 = vst [vmem:[#allocation2] sm:$0x1] %v14
  $region1: #{tpu_custom_call.1} parent=0
    #allocation3 [shape = 'u8[2048]{0}', space=vmem, size = 0x800, scoped, tag = 'output window, operand 0']
    #allocation4 [shape = 's32[2]{0}', space=sflag, size = 0x8, scoped, tag = 'scoped memory for tpu_custom_call.1']
    %16 = vsyncpa [#allocation4], 0
    %s17 = scalar_lea.sflag [#allocation4], 1
    %18 = vsyncpa %s17, 0
    loop: start=0, step=1, limit=4
    $region2: #{tpu_custom_call.1} parent=1 // loop_pre_header
      _
    $region3: #{tpu_custom_call.1} parent=1 // loop_header
      %s20 = sphi 0, %s24
      %p21 = scmp.ge.s32.totalorder %s20, 4
      %s30 = sphi 0, %s32
      %s33 = sphi 0, %s30
      %s34 = sphi 0, %s33
      %s50 = sphi 0, %s34
      %s54 = sphi 0, %s54
      %s56 = sphi 0, %s54
      %s57 = sphi 0, %s56
      %s71 = sphi 0, %s57
      %s75 = sphi 0, %s75
      %s77 = sphi 0, %s75
      %s78 = sphi 0, %s77
      %s92 = sphi 0, %s78
      %s96 = sphi 0, %s96
      %s98 = sphi 0, %s96
      %s99 = sphi 0, %s98
      %s113 = sphi 0, %s99
      %s117 = sphi 0, %s117
      %s119 = sphi 0, %s117
      %s120 = sphi 0, %s119
      %s134 = sphi 0, %s120
      %s138 = sphi 0, %s138
      %s140 = sphi 0, %s138
      %s141 = sphi 0, %s140
      %s155 = sphi 0, %s141
      %s159 = sphi 0, %s159
      %s161 = sphi 0, %s159
      %s162 = sphi 0, %s161
      %s176 = sphi 0, %s162
      %s180 = sphi 0, %s180
      %s182 = sphi 0, %s180
      %s183 = sphi 0, %s182
      %s197 = sphi 0, %s183
      %s201 = sphi 0, %s201
      %s203 = sphi 0, %s201
      %s204 = sphi 0, %s203
      %s218 = sphi 0, %s204
      %s224 = sphi 0, %s226
      %s227 = sphi 0, %s224
      %s228 = sphi 0, %s227
      %s244 = sphi 0, %s228
    $region4: #{tpu_custom_call.1} parent=1 // loop_header_branch
      %23 = sbr.rel (%p21) target = $region8
    $region5: #{tpu_custom_call.1} parent=1 // loop_body
      %s25 = ssub.s32 %s20, 1
      %s26 = ssub.s32 %s20, 2
      %s27 = sadd.s32 %s20, 1
      %s28 = ssub.s32 %s20, %s27
      %p29 = scmp.eq.s32.totalorder %s28, 0
      %s31 = sadd.s32 %s30, 1
      %s32 = scalar_select %p29, %s30, %s31
      %p35 = pneg %p29
      %p36 = scmp.eq.s32.totalorder %s20, 1
      %p37 = por %p35, %p36
      %p38 = scmp.ne.s32.totalorder %s30, %s33
      %p39 = scmp.eq.s32.totalorder %s20, 0
      %p40 = por %p38, %p39
      %p41 = scmp.ne.s32.totalorder %s30, %s33
      %p42 = scmp.eq.s32.totalorder %s25, 1
      %p43 = por %p41, %p42
      %p44 = scmp.ne.s32.totalorder %s33, %s34
      %p45 = scmp.eq.s32.totalorder %s25, 0
      %p46 = por %p44, %p45
      %p47 = scmp.ne.s32.totalorder %s33, %s34
      %p48 = scmp.eq.s32.totalorder %s26, 1
      %p49 = por %p47, %p48
      %p51 = scmp.ne.s32.totalorder %s34, %s50
      %p52 = scmp.eq.s32.totalorder %s26, 0
      %p53 = por %p51, %p52
      %s55 = sadd.s32 %s54, 1
      %p58 = scmp.eq.s32.totalorder %s20, 1
      %p59 = scmp.ne.s32.totalorder %s54, %s56
      %p60 = scmp.eq.s32.totalorder %s20, 0
      %p61 = por %p59, %p60
      %p62 = scmp.ne.s32.totalorder %s54, %s56
      %p63 = scmp.eq.s32.totalorder %s25, 1
      %p64 = por %p62, %p63
      %p65 = scmp.ne.s32.totalorder %s56, %s57
      %p66 = scmp.eq.s32.totalorder %s25, 0
      %p67 = por %p65, %p66
      %p68 = scmp.ne.s32.totalorder %s56, %s57
      %p69 = scmp.eq.s32.totalorder %s26, 1
      %p70 = por %p68, %p69
      %p72 = scmp.ne.s32.totalorder %s57, %s71
      %p73 = scmp.eq.s32.totalorder %s26, 0
      %p74 = por %p72, %p73
      %s76 = sadd.s32 %s75, 1
      %p79 = scmp.eq.s32.totalorder %s20, 1
      %p80 = scmp.ne.s32.totalorder %s75, %s77
      %p81 = scmp.eq.s32.totalorder %s20, 0
      %p82 = por %p80, %p81
      %p83 = scmp.ne.s32.totalorder %s75, %s77
      %p84 = scmp.eq.s32.totalorder %s25, 1
      %p85 = por %p83, %p84
      %p86 = scmp.ne.s32.totalorder %s77, %s78
      %p87 = scmp.eq.s32.totalorder %s25, 0
      %p88 = por %p86, %p87
      %p89 = scmp.ne.s32.totalorder %s77, %s78
      %p90 = scmp.eq.s32.totalorder %s26, 1
      %p91 = por %p89, %p90
      %p93 = scmp.ne.s32.totalorder %s78, %s92
      %p94 = scmp.eq.s32.totalorder %s26, 0
      %p95 = por %p93, %p94
      %s97 = sadd.s32 %s96, 1
      %p100 = scmp.eq.s32.totalorder %s20, 1
      %p101 = scmp.ne.s32.totalorder %s96, %s98
      %p102 = scmp.eq.s32.totalorder %s20, 0
      %p103 = por %p101, %p102
      %p104 = scmp.ne.s32.totalorder %s96, %s98
      %p105 = scmp.eq.s32.totalorder %s25, 1
      %p106 = por %p104, %p105
      %p107 = scmp.ne.s32.totalorder %s98, %s99
      %p108 = scmp.eq.s32.totalorder %s25, 0
      %p109 = por %p107, %p108
      %p110 = scmp.ne.s32.totalorder %s98, %s99
      %p111 = scmp.eq.s32.totalorder %s26, 1
      %p112 = por %p110, %p111
      %p114 = scmp.ne.s32.totalorder %s99, %s113
      %p115 = scmp.eq.s32.totalorder %s26, 0
      %p116 = por %p114, %p115
      %s118 = sadd.s32 %s117, 1
      %p121 = scmp.eq.s32.totalorder %s20, 1
      %p122 = scmp.ne.s32.totalorder %s117, %s119
      %p123 = scmp.eq.s32.totalorder %s20, 0
      %p124 = por %p122, %p123
      %p125 = scmp.ne.s32.totalorder %s117, %s119
      %p126 = scmp.eq.s32.totalorder %s25, 1
      %p127 = por %p125, %p126
      %p128 = scmp.ne.s32.totalorder %s119, %s120
      %p129 = scmp.eq.s32.totalorder %s25, 0
      %p130 = por %p128, %p129
      %p131 = scmp.ne.s32.totalorder %s119, %s120
      %p132 = scmp.eq.s32.totalorder %s26, 1
      %p133 = por %p131, %p132
      %p135 = scmp.ne.s32.totalorder %s120, %s134
      %p136 = scmp.eq.s32.totalorder %s26, 0
      %p137 = por %p135, %p136
      %s139 = sadd.s32 %s138, 1
      %p142 = scmp.eq.s32.totalorder %s20, 1
      %p143 = scmp.ne.s32.totalorder %s138, %s140
      %p144 = scmp.eq.s32.totalorder %s20, 0
      %p145 = por %p143, %p144
      %p146 = scmp.ne.s32.totalorder %s138, %s140
      %p147 = scmp.eq.s32.totalorder %s25, 1
      %p148 = por %p146, %p147
      %p149 = scmp.ne.s32.totalorder %s140, %s141
      %p150 = scmp.eq.s32.totalorder %s25, 0
      %p151 = por %p149, %p150
      %p152 = scmp.ne.s32.totalorder %s140, %s141
      %p153 = scmp.eq.s32.totalorder %s26, 1
      %p154 = por %p152, %p153
      %p156 = scmp.ne.s32.totalorder %s141, %s155
      %p157 = scmp.eq.s32.totalorder %s26, 0
      %p158 = por %p156, %p157
      %s160 = sadd.s32 %s159, 1
      %p163 = scmp.eq.s32.totalorder %s20, 1
      %p164 = scmp.ne.s32.totalorder %s159, %s161
      %p165 = scmp.eq.s32.totalorder %s20, 0
      %p166 = por %p164, %p165
      %p167 = scmp.ne.s32.totalorder %s159, %s161
      %p168 = scmp.eq.s32.totalorder %s25, 1
      %p169 = por %p167, %p168
      %p170 = scmp.ne.s32.totalorder %s161, %s162
      %p171 = scmp.eq.s32.totalorder %s25, 0
      %p172 = por %p170, %p171
      %p173 = scmp.ne.s32.totalorder %s161, %s162
      %p174 = scmp.eq.s32.totalorder %s26, 1
      %p175 = por %p173, %p174
      %p177 = scmp.ne.s32.totalorder %s162, %s176
      %p178 = scmp.eq.s32.totalorder %s26, 0
      %p179 = por %p177, %p178
      %s181 = sadd.s32 %s180, 1
      %p184 = scmp.eq.s32.totalorder %s20, 1
      %p185 = scmp.ne.s32.totalorder %s180, %s182
      %p186 = scmp.eq.s32.totalorder %s20, 0
      %p187 = por %p185, %p186
      %p188 = scmp.ne.s32.totalorder %s180, %s182
      %p189 = scmp.eq.s32.totalorder %s25, 1
      %p190 = por %p188, %p189
      %p191 = scmp.ne.s32.totalorder %s182, %s183
      %p192 = scmp.eq.s32.totalorder %s25, 0
      %p193 = por %p191, %p192
      %p194 = scmp.ne.s32.totalorder %s182, %s183
      %p195 = scmp.eq.s32.totalorder %s26, 1
      %p196 = por %p194, %p195
      %p198 = scmp.ne.s32.totalorder %s183, %s197
      %p199 = scmp.eq.s32.totalorder %s26, 0
      %p200 = por %p198, %p199
      %s202 = sadd.s32 %s201, 1
      %p205 = scmp.eq.s32.totalorder %s20, 1
      %p206 = scmp.ne.s32.totalorder %s201, %s203
      %p207 = scmp.eq.s32.totalorder %s20, 0
      %p208 = por %p206, %p207
      %p209 = scmp.ne.s32.totalorder %s201, %s203
      %p210 = scmp.eq.s32.totalorder %s25, 1
      %p211 = por %p209, %p210
      %p212 = scmp.ne.s32.totalorder %s203, %s204
      %p213 = scmp.eq.s32.totalorder %s25, 0
      %p214 = por %p212, %p213
      %p215 = scmp.ne.s32.totalorder %s203, %s204
      %p216 = scmp.eq.s32.totalorder %s26, 1
      %p217 = por %p215, %p216
      %p219 = scmp.ne.s32.totalorder %s204, %s218
      %p220 = scmp.eq.s32.totalorder %s26, 0
      %p221 = por %p219, %p220
      %s222 = ssub.s32 %s20, %s27
      %p223 = scmp.eq.s32.totalorder %s222, 0
      %s225 = sadd.s32 %s224, 1
      %s226 = scalar_select %p223, %s224, %s225
      %p229 = pneg %p223
      %p230 = scmp.eq.s32.totalorder %s20, 1
      %p231 = por %p229, %p230
      %p232 = scmp.ne.s32.totalorder %s224, %s227
      %p233 = scmp.eq.s32.totalorder %s20, 0
      %p234 = por %p232, %p233
      %p235 = scmp.ne.s32.totalorder %s224, %s227
      %p236 = scmp.eq.s32.totalorder %s25, 1
      %p237 = por %p235, %p236
      %p238 = scmp.ne.s32.totalorder %s227, %s228
      %p239 = scmp.eq.s32.totalorder %s25, 0
      %p240 = por %p238, %p239
      %p241 = scmp.ne.s32.totalorder %s227, %s228
      %p242 = scmp.eq.s32.totalorder %s26, 1
      %p243 = por %p241, %p242
      %p245 = scmp.ne.s32.totalorder %s228, %s244
      %p246 = scmp.eq.s32.totalorder %s26, 0
      %p247 = por %p245, %p246
      %p248 = scmp.le.s32.totalorder 1, %s20
      %p249 = scmp.lt.s32.totalorder %s20, 3
      %p250 = pnand %p248, %p249
      %p251 = pneg %p250
      // Predicated region
      $region9: #{tpu_custom_call.1} parent=5 // pred_check
        _
      $region10: #{tpu_custom_call.1} parent=5 // pred_check_branch
        %253 = sbr.rel (%p250) target = $region12
      $region11: #{tpu_custom_call.1} parent=5 // pred_region
        %s254 = ssub.s32 %s20, 1
        // Predicated region
        $region13: #{tpu_custom_call.1} parent=11 // pred_check
          %p255 = pneg %p67
        $region14: #{tpu_custom_call.1} parent=11 // pred_check_branch
          %257 = sbr.rel (%p255) target = $region16
        $region15: #{tpu_custom_call.1} parent=11 // pred_region
          _
        $region16: #{tpu_custom_call.1} parent=11 // pred_fallthru
          _
        // Predicated region
        $region17: #{tpu_custom_call.1} parent=11 // pred_check
          %p258 = pneg %p88
        $region18: #{tpu_custom_call.1} parent=11 // pred_check_branch
          %260 = sbr.rel (%p258) target = $region20
        $region19: #{tpu_custom_call.1} parent=11 // pred_region
          _
        $region20: #{tpu_custom_call.1} parent=11 // pred_fallthru
          _
        // Predicated region
        $region21: #{tpu_custom_call.1} parent=11 // pred_check
          %p261 = pneg %p109
        $region22: #{tpu_custom_call.1} parent=11 // pred_check_branch
          %263 = sbr.rel (%p261) target = $region24
        $region23: #{tpu_custom_call.1} parent=11 // pred_region
          _
        $region24: #{tpu_custom_call.1} parent=11 // pred_fallthru
          _
        // Predicated region
        $region25: #{tpu_custom_call.1} parent=11 // pred_check
          %p264 = pneg %p130
        $region26: #{tpu_custom_call.1} parent=11 // pred_check_branch
          %266 = sbr.rel (%p264) target = $region28
        $region27: #{tpu_custom_call.1} parent=11 // pred_region
          _
        $region28: #{tpu_custom_call.1} parent=11 // pred_fallthru
          _
        // Predicated region
        $region29: #{tpu_custom_call.1} parent=11 // pred_check
          %p267 = pneg %p151
        $region30: #{tpu_custom_call.1} parent=11 // pred_check_branch
          %269 = sbr.rel (%p267) target = $region32
        $region31: #{tpu_custom_call.1} parent=11 // pred_region
          _
        $region32: #{tpu_custom_call.1} parent=11 // pred_fallthru
          _
        // Predicated region
        $region33: #{tpu_custom_call.1} parent=11 // pred_check
          %p270 = pneg %p172
        $region34: #{tpu_custom_call.1} parent=11 // pred_check_branch
          %272 = sbr.rel (%p270) target = $region36
        $region35: #{tpu_custom_call.1} parent=11 // pred_region
          _
        $region36: #{tpu_custom_call.1} parent=11 // pred_fallthru
          _
        // Predicated region
        $region37: #{tpu_custom_call.1} parent=11 // pred_check
          %p273 = pneg %p193
        $region38: #{tpu_custom_call.1} parent=11 // pred_check_branch
          %275 = sbr.rel (%p273) target = $region40
        $region39: #{tpu_custom_call.1} parent=11 // pred_region
          _
        $region40: #{tpu_custom_call.1} parent=11 // pred_fallthru
          _
        // Predicated region
        $region41: #{tpu_custom_call.1} parent=11 // pred_check
          %p276 = pneg %p214
        $region42: #{tpu_custom_call.1} parent=11 // pred_check_branch
          %278 = sbr.rel (%p276) target = $region44
        $region43: #{tpu_custom_call.1} parent=11 // pred_region
          _
        $region44: #{tpu_custom_call.1} parent=11 // pred_fallthru
          _
      $region12: #{tpu_custom_call.1} parent=5 // pred_fallthru
        _
      %p279 = scmp.lt.s32.totalorder %s20, 2
      // Predicated region
      $region45: #{tpu_custom_call.1} parent=5 // pred_check
        %p280 = pneg %p279
      $region46: #{tpu_custom_call.1} parent=5 // pred_check_branch
        %282 = sbr.rel (%p280) target = $region48
      $region47: #{tpu_custom_call.1} parent=5 // pred_region
        // Predicated region
        $region49: #{tpu_custom_call.1} parent=47 // pred_check
          %p283 = pneg %p40
        $region50: #{tpu_custom_call.1} parent=47 // pred_check_branch
          %285 = sbr.rel (%p283) target = $region52
        $region51: #{tpu_custom_call.1} parent=47 // pred_region
          %s286 = smul.u32 32, %s20
          %p287 = scmp.lt.s32.totalorder %s286, 63
          %s288 = scalar_select %p287, %s286, 63
          %s289 = smul.addr %s288, 8
          %s290 = scalar_lea.vmem %s0, %s289
          %s291 = smul.u32 32, %s20
        $region52: #{tpu_custom_call.1} parent=47 // pred_fallthru
          _
      $region48: #{tpu_custom_call.1} parent=5 // pred_fallthru
        _
      %p292 = scmp.le.s32.totalorder 1, %s20
      %p293 = scmp.lt.s32.totalorder %s20, 3
      %p294 = pnand %p292, %p293
      %p295 = pneg %p294
      // Predicated region
      $region53: #{tpu_custom_call.1} parent=5 // pred_check
        _
      $region54: #{tpu_custom_call.1} parent=5 // pred_check_branch
        %297 = sbr.rel (%p294) target = $region56
      $region55: #{tpu_custom_call.1} parent=5 // pred_region
        %s298 = ssub.s32 %s20, 1
        %s299 = smul.u32 32, %s25
        %p300 = scmp.lt.s32.totalorder %s299, 63
        %s301 = scalar_select %p300, %s299, 63
        %s302 = smul.addr %s301, 8
        %s303 = scalar_lea.vmem %s0, %s302
        %p304 = pneg %p46
        %p305 = pneg %p43
        %p306 = pneg %p67
        %p307 = pneg %p64
        %p308 = pneg %p88
        %p309 = pneg %p85
        %p310 = pneg %p109
        %p311 = pneg %p106
        %p312 = pneg %p130
        %p313 = pneg %p127
        %p314 = pneg %p151
        %p315 = pneg %p148
        %p316 = pneg %p172
        %p317 = pneg %p169
        %p318 = pneg %p193
        %p319 = pneg %p190
        %p320 = pneg %p214
        %p321 = pneg %p211
        %p322 = pneg %p240
        %p323 = pneg %p237
        %s324 = sand.u32 %s227, 1
        %s325 = scalar_lea.sflag [#allocation4], %s324
        %s326 = sand.u32 %s227, 1
        %s327 = smul.addr %s326, 2
        %s328 = scalar_lea.vmem [#allocation3], %s327
        %s329 = smul.u32 32, %s25
        %p330 = scmp.lt.s32.totalorder %s329, 63
        %s331 = scalar_select %p330, %s329, 63
        %s332 = smul.addr %s331, 8
        %s333 = scalar_lea.vmem %s0, %s332
        %s334 = smul.u32 32, %s25
        %s335 = smul.u32 2, %s25
        %v336 = vld [vmem:[%s333] sm:$0xff]
        %v337 = vld [vmem:[%s333 + $0x8] sm:$0xff]
        %v338 = vld [vmem:[%s333 + $0x10] sm:$0xff]
        %v339 = vld [vmem:[%s333 + $0x18] sm:$0xff]
        %v340 = vld [vmem:[%s333 + $0x20] sm:$0xff]
        %v341 = vld [vmem:[%s333 + $0x28] sm:$0xff]
        %v342 = vld [vmem:[%s333 + $0x30] sm:$0xff]
        %v343 = vld [vmem:[%s333 + $0x38] sm:$0xff]
        %v344 = vld [vmem:[%s333 + $0x40] sm:$0xff]
        %v345 = vld [vmem:[%s333 + $0x48] sm:$0xff]
        %v346 = vld [vmem:[%s333 + $0x50] sm:$0xff]
        %v347 = vld [vmem:[%s333 + $0x58] sm:$0xff]
        %v348 = vld [vmem:[%s333 + $0x60] sm:$0xff]
        %v349 = vld [vmem:[%s333 + $0x68] sm:$0xff]
        %v350 = vld [vmem:[%s333 + $0x70] sm:$0xff]
        %v351 = vld [vmem:[%s333 + $0x78] sm:$0xff]
        %v352 = vld [vmem:[%s333 + $0x80] sm:$0xff]
        %v353 = vld [vmem:[%s333 + $0x88] sm:$0xff]
        %v354 = vld [vmem:[%s333 + $0x90] sm:$0xff]
        %v355 = vld [vmem:[%s333 + $0x98] sm:$0xff]
        %v356 = vld [vmem:[%s333 + $0xa0] sm:$0xff]
        %v357 = vld [vmem:[%s333 + $0xa8] sm:$0xff]
        %v358 = vld [vmem:[%s333 + $0xb0] sm:$0xff]
        %v359 = vld [vmem:[%s333 + $0xb8] sm:$0xff]
        %v360 = vld [vmem:[%s333 + $0xc0] sm:$0xff]
        %v361 = vld [vmem:[%s333 + $0xc8] sm:$0xff]
        %v362 = vld [vmem:[%s333 + $0xd0] sm:$0xff]
        %v363 = vld [vmem:[%s333 + $0xd8] sm:$0xff]
        %v364 = vld [vmem:[%s333 + $0xe0] sm:$0xff]
        %v365 = vld [vmem:[%s333 + $0xe8] sm:$0xff]
        %v366 = vld [vmem:[%s333 + $0xf0] sm:$0xff]
        %v367 = vld [vmem:[%s333 + $0xf8] sm:$0xff]
        %v368 = vld [vmem:[%s1] sm:$0xff]
        %v369 = vld [vmem:[%s1 + $0x8] sm:$0xff]
        %v370 = vld [vmem:[%s2] sm:$0x1]
        %v372 = vlaneseq
        %v373 = vshrl.u32 %v372, 7
        %v374 = vsub.s32 0, %v373
        %v375 = vrot.slane %v370, %v374
        %vm377 = vcmask 130048
        %v379 = vsel %vm377, %v336, 0
        %v382 = vsel %vm377, %v337, 0
        %v385 = vsel %vm377, %v338, 0
        %v388 = vsel %vm377, %v339, 0
        %v391 = vsel %vm377, %v340, 0
        %v394 = vsel %vm377, %v341, 0
        %v397 = vsel %vm377, %v342, 0
        %v400 = vsel %vm377, %v343, 0
        %v403 = vsel %vm377, %v344, 0
        %v406 = vsel %vm377, %v345, 0
        %v409 = vsel %vm377, %v346, 0
        %v412 = vsel %vm377, %v347, 0
        %v415 = vsel %vm377, %v348, 0
        %v418 = vsel %vm377, %v349, 0
        %v421 = vsel %vm377, %v350, 0
        %v424 = vsel %vm377, %v351, 0
        %v427 = vsel %vm377, %v352, 0
        %v430 = vsel %vm377, %v353, 0
        %v433 = vsel %vm377, %v354, 0
        %v436 = vsel %vm377, %v355, 0
        %v439 = vsel %vm377, %v356, 0
        %v442 = vsel %vm377, %v357, 0
        %v445 = vsel %vm377, %v358, 0
        %v448 = vsel %vm377, %v359, 0
        %v451 = vsel %vm377, %v360, 0
        %v454 = vsel %vm377, %v361, 0
        %v457 = vsel %vm377, %v362, 0
        %v460 = vsel %vm377, %v363, 0
        %v463 = vsel %vm377, %v364, 0
        %v466 = vsel %vm377, %v365, 0
        %v469 = vsel %vm377, %v366, 0
        %v472 = vsel %vm377, %v367, 0
        %474 = vmatprep.subr.mxu0 0.0
        %475 = vmatpush1.msra.mxu0 0.0
        %476 = vmatprep.subr.mxu0 0.0
        %477 = vmatpush1.msra.mxu0 0.0
        %478 = vmatprep.subr.mxu0 0.0
        %479 = vmatpush1.msra.mxu0 0.0
        %480 = vmatprep.subr.mxu0 0.0
        %481 = vmatpush1.msra.mxu0 0.0
        %482 = vmatprep.subr.mxu0 0.0
        %483 = vmatpush1.msra.mxu0 0.0
        %484 = vmatprep.subr.mxu0 0.0
        %485 = vmatpush1.msra.mxu0 0.0
        %486 = vmatprep.subr.mxu0 0.0
        %487 = vmatpush1.msra.mxu0 0.0
        %488 = vmatprep.subr.mxu0 0.0
        %489 = vmatpush1.msra.mxu0 0.0
        %490 = vmatprep.subr.mxu0 0.0
        %491 = vmatpush1.msra.mxu0 0.0
        %492 = vmatprep.subr.mxu0 0.0
        %493 = vmatpush1.msra.mxu0 0.0
        %494 = vmatprep.subr.mxu0 0.0
        %495 = vmatpush1.msra.mxu0 0.0
        %496 = vmatprep.subr.mxu0 0.0
        %497 = vmatpush1.msra.mxu0 0.0
        %498 = vmatprep.subr.mxu0 0.0
        %499 = vmatpush1.msra.mxu0 0.0
        %500 = vmatprep.subr.mxu0 0.0
        %501 = vmatpush1.msra.mxu0 0.0
        %502 = vmatprep.subr.mxu0 0.0
        %503 = vmatpush1.msra.mxu0 %v369
        %504 = vmatprep.subr.mxu0 0.0
        %505 = vmatpush1.msra.mxu0 %v368
        %506 = vmatprep.subr.mxu0 0.0
        %507 = vmatpush2.msra.mxu0 0.0
        %508 = vmatprep.subr.mxu0 0.0
        %509 = vmatpush2.msra.mxu0 0.0
        %510 = vmatprep.subr.mxu0 0.0
        %511 = vmatpush2.msra.mxu0 0.0
        %512 = vmatprep.subr.mxu0 0.0
        %513 = vmatpush2.msra.mxu0 0.0
        %514 = vmatprep.subr.mxu0 0.0
        %515 = vmatpush2.msra.mxu0 0.0
        %516 = vmatprep.subr.mxu0 0.0
        %517 = vmatpush2.msra.mxu0 0.0
        %518 = vmatprep.subr.mxu0 0.0
        %519 = vmatpush2.msra.mxu0 0.0
        %520 = vmatprep.subr.mxu0 0.0
        %521 = vmatpush2.msra.mxu0 0.0
        %522 = vmatprep.subr.mxu0 0.0
        %523 = vmatpush2.msra.mxu0 0.0
        %524 = vmatprep.subr.mxu0 0.0
        %525 = vmatpush2.msra.mxu0 0.0
        %526 = vmatprep.subr.mxu0 0.0
        %527 = vmatpush2.msra.mxu0 0.0
        %528 = vmatprep.subr.mxu0 0.0
        %529 = vmatpush2.msra.mxu0 0.0
        %530 = vmatprep.subr.mxu0 0.0
        %531 = vmatpush2.msra.mxu0 0.0
        %532 = vmatprep.subr.mxu0 0.0
        %533 = vmatpush2.msra.mxu0 0.0
        %534 = vmatprep.subr.mxu0 0.0
        %535 = vmatpush2.msra.mxu0 0.0
        %536 = vmatprep.subr.mxu0 0.0
        %537 = vmatpush2.msra.mxu0 0.0
        %538 = vmatprep.mubr.f32.mxu0 0.0
        %539 = vmatmul.mubr.f32.gmra.mxu0 %v379
        %v540 = vpop.f32.mrf.mxu0
        %v541 = vadd.f32 %v375, %v540
        %v542 = vpop.f32.mrf.mxu0
        %543 = vmatprep.mubr.f32.mxu0 0.0
        %544 = vmatmul.mubr.f32.gmra.mxu0 %v382
        %v545 = vpop.f32.mrf.mxu0
        %v546 = vadd.f32 %v375, %v545
        %v547 = vpop.f32.mrf.mxu0
        %548 = vmatprep.mubr.f32.mxu0 0.0
        %549 = vmatmul.mubr.f32.gmra.mxu0 %v385
        %v550 = vpop.f32.mrf.mxu0
        %v551 = vadd.f32 %v375, %v550
        %v552 = vpop.f32.mrf.mxu0
        %553 = vmatprep.mubr.f32.mxu0 0.0
        %554 = vmatmul.mubr.f32.gmra.mxu0 %v388
        %v555 = vpop.f32.mrf.mxu0
        %v556 = vadd.f32 %v375, %v555
        %v557 = vpop.f32.mrf.mxu0
        %558 = vmatprep.mubr.f32.mxu0 0.0
        %559 = vmatmul.mubr.f32.gmra.mxu0 %v391
        %v560 = vpop.f32.mrf.mxu0
        %v561 = vadd.f32 %v375, %v560
        %v562 = vpop.f32.mrf.mxu0
        %563 = vmatprep.mubr.f32.mxu0 0.0
        %564 = vmatmul.mubr.f32.gmra.mxu0 %v394
        %v565 = vpop.f32.mrf.mxu0
        %v566 = vadd.f32 %v375, %v565
        %v567 = vpop.f32.mrf.mxu0
        %568 = vmatprep.mubr.f32.mxu0 0.0
        %569 = vmatmul.mubr.f32.gmra.mxu0 %v397
        %v570 = vpop.f32.mrf.mxu0
        %v571 = vadd.f32 %v375, %v570
        %v572 = vpop.f32.mrf.mxu0
        %573 = vmatprep.mubr.f32.mxu0 0.0
        %574 = vmatmul.mubr.f32.gmra.mxu0 %v400
        %v575 = vpop.f32.mrf.mxu0
        %v576 = vadd.f32 %v375, %v575
        %v577 = vpop.f32.mrf.mxu0
        %578 = vmatprep.mubr.f32.mxu0 0.0
        %579 = vmatmul.mubr.f32.gmra.mxu0 %v403
        %v580 = vpop.f32.mrf.mxu0
        %v581 = vadd.f32 %v375, %v580
        %v582 = vpop.f32.mrf.mxu0
        %583 = vmatprep.mubr.f32.mxu0 0.0
        %584 = vmatmul.mubr.f32.gmra.mxu0 %v406
        %v585 = vpop.f32.mrf.mxu0
        %v586 = vadd.f32 %v375, %v585
        %v587 = vpop.f32.mrf.mxu0
        %588 = vmatprep.mubr.f32.mxu0 0.0
        %589 = vmatmul.mubr.f32.gmra.mxu0 %v409
        %v590 = vpop.f32.mrf.mxu0
        %v591 = vadd.f32 %v375, %v590
        %v592 = vpop.f32.mrf.mxu0
        %593 = vmatprep.mubr.f32.mxu0 0.0
        %594 = vmatmul.mubr.f32.gmra.mxu0 %v412
        %v595 = vpop.f32.mrf.mxu0
        %v596 = vadd.f32 %v375, %v595
        %v597 = vpop.f32.mrf.mxu0
        %598 = vmatprep.mubr.f32.mxu0 0.0
        %599 = vmatmul.mubr.f32.gmra.mxu0 %v415
        %v600 = vpop.f32.mrf.mxu0
        %v601 = vadd.f32 %v375, %v600
        %v602 = vpop.f32.mrf.mxu0
        %603 = vmatprep.mubr.f32.mxu0 0.0
        %604 = vmatmul.mubr.f32.gmra.mxu0 %v418
        %v605 = vpop.f32.mrf.mxu0
        %v606 = vadd.f32 %v375, %v605
        %v607 = vpop.f32.mrf.mxu0
        %608 = vmatprep.mubr.f32.mxu0 0.0
        %609 = vmatmul.mubr.f32.gmra.mxu0 %v421
        %v610 = vpop.f32.mrf.mxu0
        %v611 = vadd.f32 %v375, %v610
        %v612 = vpop.f32.mrf.mxu0
        %613 = vmatprep.mubr.f32.mxu0 0.0
        %614 = vmatmul.mubr.f32.gmra.mxu0 %v424
        %v615 = vpop.f32.mrf.mxu0
        %v616 = vadd.f32 %v375, %v615
        %v617 = vpop.f32.mrf.mxu0
        %618 = vmatprep.mubr.f32.mxu0 0.0
        %619 = vmatmul.mubr.f32.gmra.mxu0 %v427
        %v620 = vpop.f32.mrf.mxu0
        %v621 = vadd.f32 %v375, %v620
        %v622 = vpop.f32.mrf.mxu0
        %623 = vmatprep.mubr.f32.mxu0 0.0
        %624 = vmatmul.mubr.f32.gmra.mxu0 %v430
        %v625 = vpop.f32.mrf.mxu0
        %v626 = vadd.f32 %v375, %v625
        %v627 = vpop.f32.mrf.mxu0
        %628 = vmatprep.mubr.f32.mxu0 0.0
        %629 = vmatmul.mubr.f32.gmra.mxu0 %v433
        %v630 = vpop.f32.mrf.mxu0
        %v631 = vadd.f32 %v375, %v630
        %v632 = vpop.f32.mrf.mxu0
        %633 = vmatprep.mubr.f32.mxu0 0.0
        %634 = vmatmul.mubr.f32.gmra.mxu0 %v436
        %v635 = vpop.f32.mrf.mxu0
        %v636 = vadd.f32 %v375, %v635
        %v637 = vpop.f32.mrf.mxu0
        %638 = vmatprep.mubr.f32.mxu0 0.0
        %639 = vmatmul.mubr.f32.gmra.mxu0 %v439
        %v640 = vpop.f32.mrf.mxu0
        %v641 = vadd.f32 %v375, %v640
        %v642 = vpop.f32.mrf.mxu0
        %643 = vmatprep.mubr.f32.mxu0 0.0
        %644 = vmatmul.mubr.f32.gmra.mxu0 %v442
        %v645 = vpop.f32.mrf.mxu0
        %v646 = vadd.f32 %v375, %v645
        %v647 = vpop.f32.mrf.mxu0
        %648 = vmatprep.mubr.f32.mxu0 0.0
        %649 = vmatmul.mubr.f32.gmra.mxu0 %v445
        %v650 = vpop.f32.mrf.mxu0
        %v651 = vadd.f32 %v375, %v650
        %v652 = vpop.f32.mrf.mxu0
        %653 = vmatprep.mubr.f32.mxu0 0.0
        %654 = vmatmul.mubr.f32.gmra.mxu0 %v448
        %v655 = vpop.f32.mrf.mxu0
        %v656 = vadd.f32 %v375, %v655
        %v657 = vpop.f32.mrf.mxu0
        %658 = vmatprep.mubr.f32.mxu0 0.0
        %659 = vmatmul.mubr.f32.gmra.mxu0 %v451
        %v660 = vpop.f32.mrf.mxu0
        %v661 = vadd.f32 %v375, %v660
        %v662 = vpop.f32.mrf.mxu0
        %663 = vmatprep.mubr.f32.mxu0 0.0
        %664 = vmatmul.mubr.f32.gmra.mxu0 %v454
        %v665 = vpop.f32.mrf.mxu0
        %v666 = vadd.f32 %v375, %v665
        %v667 = vpop.f32.mrf.mxu0
        %668 = vmatprep.mubr.f32.mxu0 0.0
        %669 = vmatmul.mubr.f32.gmra.mxu0 %v457
        %v670 = vpop.f32.mrf.mxu0
        %v671 = vadd.f32 %v375, %v670
        %v672 = vpop.f32.mrf.mxu0
        %673 = vmatprep.mubr.f32.mxu0 0.0
        %674 = vmatmul.mubr.f32.gmra.mxu0 %v460
        %v675 = vpop.f32.mrf.mxu0
        %v676 = vadd.f32 %v375, %v675
        %v677 = vpop.f32.mrf.mxu0
        %678 = vmatprep.mubr.f32.mxu0 0.0
        %679 = vmatmul.mubr.f32.gmra.mxu0 %v463
        %v680 = vpop.f32.mrf.mxu0
        %v681 = vadd.f32 %v375, %v680
        %v682 = vpop.f32.mrf.mxu0
        %683 = vmatprep.mubr.f32.mxu0 0.0
        %684 = vmatmul.mubr.f32.gmra.mxu0 %v466
        %v685 = vpop.f32.mrf.mxu0
        %v686 = vadd.f32 %v375, %v685
        %v687 = vpop.f32.mrf.mxu0
        %688 = vmatprep.mubr.f32.mxu0 0.0
        %689 = vmatmul.mubr.f32.gmra.mxu0 %v469
        %v690 = vpop.f32.mrf.mxu0
        %v691 = vadd.f32 %v375, %v690
        %v692 = vpop.f32.mrf.mxu0
        %693 = vmatprep.mubr.f32.mxu0 0.0
        %694 = vmatmul.mubr.f32.gmra.mxu0 %v472
        %v695 = vpop.f32.mrf.mxu0
        %v696 = vadd.f32 %v375, %v695
        %v697 = vpop.f32.mrf.mxu0
        %698 = vdwg.mxu0
        %v699 = vtanh.pop %v541
        %v700 = vtanh.pop %v546
        %v701 = vtanh.pop %v551
        %v702 = vtanh.pop %v556
        %v703 = vtanh.pop %v561
        %v704 = vtanh.pop %v566
        %v705 = vtanh.pop %v571
        %v706 = vtanh.pop %v576
        %v707 = vtanh.pop %v581
        %v708 = vtanh.pop %v586
        %v709 = vtanh.pop %v591
        %v710 = vtanh.pop %v596
        %v711 = vtanh.pop %v601
        %v712 = vtanh.pop %v606
        %v713 = vtanh.pop %v611
        %v714 = vtanh.pop %v616
        %v715 = vtanh.pop %v621
        %v716 = vtanh.pop %v626
        %v717 = vtanh.pop %v631
        %v718 = vtanh.pop %v636
        %v719 = vtanh.pop %v641
        %v720 = vtanh.pop %v646
        %v721 = vtanh.pop %v651
        %v722 = vtanh.pop %v656
        %v723 = vtanh.pop %v661
        %v724 = vtanh.pop %v666
        %v725 = vtanh.pop %v671
        %v726 = vtanh.pop %v676
        %v727 = vtanh.pop %v681
        %v728 = vtanh.pop %v686
        %v729 = vtanh.pop %v691
        %v730 = vtanh.pop %v696
        %v731 = vld [vmem:[%s3] sm:$0xff]
        %v732 = vld [vmem:[%s3 + $0x8] sm:$0xff]
        %v733 = vld [vmem:[%s3 + $0x10] sm:$0xff]
        %v734 = vld [vmem:[%s3 + $0x18] sm:$0xff]
        %v735 = vld [vmem:[%s4] sm:$0x1]
        %v737 = vlaneseq
        %v738 = vshrl.u32 %v737, 7
        %v739 = vsub.s32 0, %v738
        %v740 = vrot.slane %v735, %v739
        %vm742 = vcmask 261120
        %v744 = vsel %vm742, %v699, 0
        %v747 = vsel %vm742, %v700, 0
        %v750 = vsel %vm742, %v701, 0
        %v753 = vsel %vm742, %v702, 0
        %v756 = vsel %vm742, %v703, 0
        %v759 = vsel %vm742, %v704, 0
        %v762 = vsel %vm742, %v705, 0
        %v765 = vsel %vm742, %v706, 0
        %v768 = vsel %vm742, %v707, 0
        %v771 = vsel %vm742, %v708, 0
        %v774 = vsel %vm742, %v709, 0
        %v777 = vsel %vm742, %v710, 0
        %v780 = vsel %vm742, %v711, 0
        %v783 = vsel %vm742, %v712, 0
        %v786 = vsel %vm742, %v713, 0
        %v789 = vsel %vm742, %v714, 0
        %v792 = vsel %vm742, %v715, 0
        %v795 = vsel %vm742, %v716, 0
        %v798 = vsel %vm742, %v717, 0
        %v801 = vsel %vm742, %v718, 0
        %v804 = vsel %vm742, %v719, 0
        %v807 = vsel %vm742, %v720, 0
        %v810 = vsel %vm742, %v721, 0
        %v813 = vsel %vm742, %v722, 0
        %v816 = vsel %vm742, %v723, 0
        %v819 = vsel %vm742, %v724, 0
        %v822 = vsel %vm742, %v725, 0
        %v825 = vsel %vm742, %v726, 0
        %v828 = vsel %vm742, %v727, 0
        %v831 = vsel %vm742, %v728, 0
        %v834 = vsel %vm742, %v729, 0
        %v837 = vsel %vm742, %v730, 0
        %839 = vmatprep.subr.mxu0 0.0
        %840 = vmatpush1.msra.mxu0 0.0
        %841 = vmatprep.subr.mxu0 0.0
        %842 = vmatpush1.msra.mxu0 0.0
        %843 = vmatprep.subr.mxu0 0.0
        %844 = vmatpush1.msra.mxu0 0.0
        %845 = vmatprep.subr.mxu0 0.0
        %846 = vmatpush1.msra.mxu0 0.0
        %847 = vmatprep.subr.mxu0 0.0
        %848 = vmatpush1.msra.mxu0 0.0
        %849 = vmatprep.subr.mxu0 0.0
        %850 = vmatpush1.msra.mxu0 0.0
        %851 = vmatprep.subr.mxu0 0.0
        %852 = vmatpush1.msra.mxu0 0.0
        %853 = vmatprep.subr.mxu0 0.0
        %854 = vmatpush1.msra.mxu0 0.0
        %855 = vmatprep.subr.mxu0 0.0
        %856 = vmatpush1.msra.mxu0 0.0
        %857 = vmatprep.subr.mxu0 0.0
        %858 = vmatpush1.msra.mxu0 0.0
        %859 = vmatprep.subr.mxu0 0.0
        %860 = vmatpush1.msra.mxu0 0.0
        %861 = vmatprep.subr.mxu0 0.0
        %862 = vmatpush1.msra.mxu0 0.0
        %863 = vmatprep.subr.mxu0 0.0
        %864 = vmatpush1.msra.mxu0 %v734
        %865 = vmatprep.subr.mxu0 0.0
        %866 = vmatpush1.msra.mxu0 %v733
        %867 = vmatprep.subr.mxu0 0.0
        %868 = vmatpush1.msra.mxu0 %v732
        %869 = vmatprep.subr.mxu0 0.0
        %870 = vmatpush1.msra.mxu0 %v731
        %871 = vmatprep.subr.mxu0 0.0
        %872 = vmatpush2.msra.mxu0 0.0
        %873 = vmatprep.subr.mxu0 0.0
        %874 = vmatpush2.msra.mxu0 0.0
        %875 = vmatprep.subr.mxu0 0.0
        %876 = vmatpush2.msra.mxu0 0.0
        %877 = vmatprep.subr.mxu0 0.0
        %878 = vmatpush2.msra.mxu0 0.0
        %879 = vmatprep.subr.mxu0 0.0
        %880 = vmatpush2.msra.mxu0 0.0
        %881 = vmatprep.subr.mxu0 0.0
        %882 = vmatpush2.msra.mxu0 0.0
        %883 = vmatprep.subr.mxu0 0.0
        %884 = vmatpush2.msra.mxu0 0.0
        %885 = vmatprep.subr.mxu0 0.0
        %886 = vmatpush2.msra.mxu0 0.0
        %887 = vmatprep.subr.mxu0 0.0
        %888 = vmatpush2.msra.mxu0 0.0
        %889 = vmatprep.subr.mxu0 0.0
        %890 = vmatpush2.msra.mxu0 0.0
        %891 = vmatprep.subr.mxu0 0.0
        %892 = vmatpush2.msra.mxu0 0.0
        %893 = vmatprep.subr.mxu0 0.0
        %894 = vmatpush2.msra.mxu0 0.0
        %895 = vmatprep.subr.mxu0 0.0
        %896 = vmatpush2.msra.mxu0 0.0
        %897 = vmatprep.subr.mxu0 0.0
        %898 = vmatpush2.msra.mxu0 0.0
        %899 = vmatprep.subr.mxu0 0.0
        %900 = vmatpush2.msra.mxu0 0.0
        %901 = vmatprep.subr.mxu0 0.0
        %902 = vmatpush2.msra.mxu0 0.0
        %903 = vmatprep.mubr.f32.mxu0 0.0
        %904 = vmatmul.mubr.f32.gmra.mxu0 %v744
        %v905 = vpop.f32.mrf.mxu0
        %v906 = vadd.f32 %v740, %v905
        %v907 = vpop.f32.mrf.mxu0
        %908 = vmatprep.mubr.f32.mxu0 0.0
        %909 = vmatmul.mubr.f32.gmra.mxu0 %v747
        %v910 = vpop.f32.mrf.mxu0
        %v911 = vadd.f32 %v740, %v910
        %v912 = vpop.f32.mrf.mxu0
        %913 = vmatprep.mubr.f32.mxu0 0.0
        %914 = vmatmul.mubr.f32.gmra.mxu0 %v750
        %v915 = vpop.f32.mrf.mxu0
        %v916 = vadd.f32 %v740, %v915
        %v917 = vpop.f32.mrf.mxu0
        %918 = vmatprep.mubr.f32.mxu0 0.0
        %919 = vmatmul.mubr.f32.gmra.mxu0 %v753
        %v920 = vpop.f32.mrf.mxu0
        %v921 = vadd.f32 %v740, %v920
        %v922 = vpop.f32.mrf.mxu0
        %923 = vmatprep.mubr.f32.mxu0 0.0
        %924 = vmatmul.mubr.f32.gmra.mxu0 %v756
        %v925 = vpop.f32.mrf.mxu0
        %v926 = vadd.f32 %v740, %v925
        %v927 = vpop.f32.mrf.mxu0
        %928 = vmatprep.mubr.f32.mxu0 0.0
        %929 = vmatmul.mubr.f32.gmra.mxu0 %v759
        %v930 = vpop.f32.mrf.mxu0
        %v931 = vadd.f32 %v740, %v930
        %v932 = vpop.f32.mrf.mxu0
        %933 = vmatprep.mubr.f32.mxu0 0.0
        %934 = vmatmul.mubr.f32.gmra.mxu0 %v762
        %v935 = vpop.f32.mrf.mxu0
        %v936 = vadd.f32 %v740, %v935
        %v937 = vpop.f32.mrf.mxu0
        %938 = vmatprep.mubr.f32.mxu0 0.0
        %939 = vmatmul.mubr.f32.gmra.mxu0 %v765
        %v940 = vpop.f32.mrf.mxu0
        %v941 = vadd.f32 %v740, %v940
        %v942 = vpop.f32.mrf.mxu0
        %943 = vmatprep.mubr.f32.mxu0 0.0
        %944 = vmatmul.mubr.f32.gmra.mxu0 %v768
        %v945 = vpop.f32.mrf.mxu0
        %v946 = vadd.f32 %v740, %v945
        %v947 = vpop.f32.mrf.mxu0
        %948 = vmatprep.mubr.f32.mxu0 0.0
        %949 = vmatmul.mubr.f32.gmra.mxu0 %v771
        %v950 = vpop.f32.mrf.mxu0
        %v951 = vadd.f32 %v740, %v950
        %v952 = vpop.f32.mrf.mxu0
        %953 = vmatprep.mubr.f32.mxu0 0.0
        %954 = vmatmul.mubr.f32.gmra.mxu0 %v774
        %v955 = vpop.f32.mrf.mxu0
        %v956 = vadd.f32 %v740, %v955
        %v957 = vpop.f32.mrf.mxu0
        %958 = vmatprep.mubr.f32.mxu0 0.0
        %959 = vmatmul.mubr.f32.gmra.mxu0 %v777
        %v960 = vpop.f32.mrf.mxu0
        %v961 = vadd.f32 %v740, %v960
        %v962 = vpop.f32.mrf.mxu0
        %963 = vmatprep.mubr.f32.mxu0 0.0
        %964 = vmatmul.mubr.f32.gmra.mxu0 %v780
        %v965 = vpop.f32.mrf.mxu0
        %v966 = vadd.f32 %v740, %v965
        %v967 = vpop.f32.mrf.mxu0
        %968 = vmatprep.mubr.f32.mxu0 0.0
        %969 = vmatmul.mubr.f32.gmra.mxu0 %v783
        %v970 = vpop.f32.mrf.mxu0
        %v971 = vadd.f32 %v740, %v970
        %v972 = vpop.f32.mrf.mxu0
        %973 = vmatprep.mubr.f32.mxu0 0.0
        %974 = vmatmul.mubr.f32.gmra.mxu0 %v786
        %v975 = vpop.f32.mrf.mxu0
        %v976 = vadd.f32 %v740, %v975
        %v977 = vpop.f32.mrf.mxu0
        %978 = vmatprep.mubr.f32.mxu0 0.0
        %979 = vmatmul.mubr.f32.gmra.mxu0 %v789
        %v980 = vpop.f32.mrf.mxu0
        %v981 = vadd.f32 %v740, %v980
        %v982 = vpop.f32.mrf.mxu0
        %983 = vmatprep.mubr.f32.mxu0 0.0
        %984 = vmatmul.mubr.f32.gmra.mxu0 %v792
        %v985 = vpop.f32.mrf.mxu0
        %v986 = vadd.f32 %v740, %v985
        %v987 = vpop.f32.mrf.mxu0
        %988 = vmatprep.mubr.f32.mxu0 0.0
        %989 = vmatmul.mubr.f32.gmra.mxu0 %v795
        %v990 = vpop.f32.mrf.mxu0
        %v991 = vadd.f32 %v740, %v990
        %v992 = vpop.f32.mrf.mxu0
        %993 = vmatprep.mubr.f32.mxu0 0.0
        %994 = vmatmul.mubr.f32.gmra.mxu0 %v798
        %v995 = vpop.f32.mrf.mxu0
        %v996 = vadd.f32 %v740, %v995
        %v997 = vpop.f32.mrf.mxu0
        %998 = vmatprep.mubr.f32.mxu0 0.0
        %999 = vmatmul.mubr.f32.gmra.mxu0 %v801
        %v1000 = vpop.f32.mrf.mxu0
        %v1001 = vadd.f32 %v740, %v1000
        %v1002 = vpop.f32.mrf.mxu0
        %1003 = vmatprep.mubr.f32.mxu0 0.0
        %1004 = vmatmul.mubr.f32.gmra.mxu0 %v804
        %v1005 = vpop.f32.mrf.mxu0
        %v1006 = vadd.f32 %v740, %v1005
        %v1007 = vpop.f32.mrf.mxu0
        %1008 = vmatprep.mubr.f32.mxu0 0.0
        %1009 = vmatmul.mubr.f32.gmra.mxu0 %v807
        %v1010 = vpop.f32.mrf.mxu0
        %v1011 = vadd.f32 %v740, %v1010
        %v1012 = vpop.f32.mrf.mxu0
        %1013 = vmatprep.mubr.f32.mxu0 0.0
        %1014 = vmatmul.mubr.f32.gmra.mxu0 %v810
        %v1015 = vpop.f32.mrf.mxu0
        %v1016 = vadd.f32 %v740, %v1015
        %v1017 = vpop.f32.mrf.mxu0
        %1018 = vmatprep.mubr.f32.mxu0 0.0
        %1019 = vmatmul.mubr.f32.gmra.mxu0 %v813
        %v1020 = vpop.f32.mrf.mxu0
        %v1021 = vadd.f32 %v740, %v1020
        %v1022 = vpop.f32.mrf.mxu0
        %1023 = vmatprep.mubr.f32.mxu0 0.0
        %1024 = vmatmul.mubr.f32.gmra.mxu0 %v816
        %v1025 = vpop.f32.mrf.mxu0
        %v1026 = vadd.f32 %v740, %v1025
        %v1027 = vpop.f32.mrf.mxu0
        %1028 = vmatprep.mubr.f32.mxu0 0.0
        %1029 = vmatmul.mubr.f32.gmra.mxu0 %v819
        %v1030 = vpop.f32.mrf.mxu0
        %v1031 = vadd.f32 %v740, %v1030
        %v1032 = vpop.f32.mrf.mxu0
        %1033 = vmatprep.mubr.f32.mxu0 0.0
        %1034 = vmatmul.mubr.f32.gmra.mxu0 %v822
        %v1035 = vpop.f32.mrf.mxu0
        %v1036 = vadd.f32 %v740, %v1035
        %v1037 = vpop.f32.mrf.mxu0
        %1038 = vmatprep.mubr.f32.mxu0 0.0
        %1039 = vmatmul.mubr.f32.gmra.mxu0 %v825
        %v1040 = vpop.f32.mrf.mxu0
        %v1041 = vadd.f32 %v740, %v1040
        %v1042 = vpop.f32.mrf.mxu0
        %1043 = vmatprep.mubr.f32.mxu0 0.0
        %1044 = vmatmul.mubr.f32.gmra.mxu0 %v828
        %v1045 = vpop.f32.mrf.mxu0
        %v1046 = vadd.f32 %v740, %v1045
        %v1047 = vpop.f32.mrf.mxu0
        %1048 = vmatprep.mubr.f32.mxu0 0.0
        %1049 = vmatmul.mubr.f32.gmra.mxu0 %v831
        %v1050 = vpop.f32.mrf.mxu0
        %v1051 = vadd.f32 %v740, %v1050
        %v1052 = vpop.f32.mrf.mxu0
        %1053 = vmatprep.mubr.f32.mxu0 0.0
        %1054 = vmatmul.mubr.f32.gmra.mxu0 %v834
        %v1055 = vpop.f32.mrf.mxu0
        %v1056 = vadd.f32 %v740, %v1055
        %v1057 = vpop.f32.mrf.mxu0
        %1058 = vmatprep.mubr.f32.mxu0 0.0
        %1059 = vmatmul.mubr.f32.gmra.mxu0 %v837
        %v1060 = vpop.f32.mrf.mxu0
        %v1061 = vadd.f32 %v740, %v1060
        %v1062 = vpop.f32.mrf.mxu0
        %1063 = vdwg.mxu0
        %v1064 = vtanh.pop %v906
        %v1065 = vtanh.pop %v911
        %v1066 = vtanh.pop %v916
        %v1067 = vtanh.pop %v921
        %v1068 = vtanh.pop %v926
        %v1069 = vtanh.pop %v931
        %v1070 = vtanh.pop %v936
        %v1071 = vtanh.pop %v941
        %v1072 = vtanh.pop %v946
        %v1073 = vtanh.pop %v951
        %v1074 = vtanh.pop %v956
        %v1075 = vtanh.pop %v961
        %v1076 = vtanh.pop %v966
        %v1077 = vtanh.pop %v971
        %v1078 = vtanh.pop %v976
        %v1079 = vtanh.pop %v981
        %v1080 = vtanh.pop %v986
        %v1081 = vtanh.pop %v991
        %v1082 = vtanh.pop %v996
        %v1083 = vtanh.pop %v1001
        %v1084 = vtanh.pop %v1006
        %v1085 = vtanh.pop %v1011
        %v1086 = vtanh.pop %v1016
        %v1087 = vtanh.pop %v1021
        %v1088 = vtanh.pop %v1026
        %v1089 = vtanh.pop %v1031
        %v1090 = vtanh.pop %v1036
        %v1091 = vtanh.pop %v1041
        %v1092 = vtanh.pop %v1046
        %v1093 = vtanh.pop %v1051
        %v1094 = vtanh.pop %v1056
        %v1095 = vtanh.pop %v1061
        %v1096 = vld [vmem:[%s5] sm:$0xff]
        %v1097 = vld [vmem:[%s5 + $0x8] sm:$0xff]
        %v1098 = vld [vmem:[%s5 + $0x10] sm:$0xff]
        %v1099 = vld [vmem:[%s5 + $0x18] sm:$0xff]
        %v1100 = vld [vmem:[%s6] sm:$0x1]
        %v1102 = vlaneseq
        %v1103 = vshrl.u32 %v1102, 7
        %v1104 = vsub.s32 0, %v1103
        %v1105 = vrot.slane %v1100, %v1104
        %v1108 = vsel %vm742, %v1064, 0
        %v1111 = vsel %vm742, %v1065, 0
        %v1114 = vsel %vm742, %v1066, 0
        %v1117 = vsel %vm742, %v1067, 0
        %v1120 = vsel %vm742, %v1068, 0
        %v1123 = vsel %vm742, %v1069, 0
        %v1126 = vsel %vm742, %v1070, 0
        %v1129 = vsel %vm742, %v1071, 0
        %v1132 = vsel %vm742, %v1072, 0
        %v1135 = vsel %vm742, %v1073, 0
        %v1138 = vsel %vm742, %v1074, 0
        %v1141 = vsel %vm742, %v1075, 0
        %v1144 = vsel %vm742, %v1076, 0
        %v1147 = vsel %vm742, %v1077, 0
        %v1150 = vsel %vm742, %v1078, 0
        %v1153 = vsel %vm742, %v1079, 0
        %v1156 = vsel %vm742, %v1080, 0
        %v1159 = vsel %vm742, %v1081, 0
        %v1162 = vsel %vm742, %v1082, 0
        %v1165 = vsel %vm742, %v1083, 0
        %v1168 = vsel %vm742, %v1084, 0
        %v1171 = vsel %vm742, %v1085, 0
        %v1174 = vsel %vm742, %v1086, 0
        %v1177 = vsel %vm742, %v1087, 0
        %v1180 = vsel %vm742, %v1088, 0
        %v1183 = vsel %vm742, %v1089, 0
        %v1186 = vsel %vm742, %v1090, 0
        %v1189 = vsel %vm742, %v1091, 0
        %v1192 = vsel %vm742, %v1092, 0
        %v1195 = vsel %vm742, %v1093, 0
        %v1198 = vsel %vm742, %v1094, 0
        %v1201 = vsel %vm742, %v1095, 0
        %1203 = vmatprep.subr.mxu0 0.0
        %1204 = vmatpush1.msra.mxu0 0.0
        %1205 = vmatprep.subr.mxu0 0.0
        %1206 = vmatpush1.msra.mxu0 0.0
        %1207 = vmatprep.subr.mxu0 0.0
        %1208 = vmatpush1.msra.mxu0 0.0
        %1209 = vmatprep.subr.mxu0 0.0
        %1210 = vmatpush1.msra.mxu0 0.0
        %1211 = vmatprep.subr.mxu0 0.0
        %1212 = vmatpush1.msra.mxu0 0.0
        %1213 = vmatprep.subr.mxu0 0.0
        %1214 = vmatpush1.msra.mxu0 0.0
        %1215 = vmatprep.subr.mxu0 0.0
        %1216 = vmatpush1.msra.mxu0 0.0
        %1217 = vmatprep.subr.mxu0 0.0
        %1218 = vmatpush1.msra.mxu0 0.0
        %1219 = vmatprep.subr.mxu0 0.0
        %1220 = vmatpush1.msra.mxu0 0.0
        %1221 = vmatprep.subr.mxu0 0.0
        %1222 = vmatpush1.msra.mxu0 0.0
        %1223 = vmatprep.subr.mxu0 0.0
        %1224 = vmatpush1.msra.mxu0 0.0
        %1225 = vmatprep.subr.mxu0 0.0
        %1226 = vmatpush1.msra.mxu0 0.0
        %1227 = vmatprep.subr.mxu0 0.0
        %1228 = vmatpush1.msra.mxu0 %v1099
        %1229 = vmatprep.subr.mxu0 0.0
        %1230 = vmatpush1.msra.mxu0 %v1098
        %1231 = vmatprep.subr.mxu0 0.0
        %1232 = vmatpush1.msra.mxu0 %v1097
        %1233 = vmatprep.subr.mxu0 0.0
        %1234 = vmatpush1.msra.mxu0 %v1096
        %1235 = vmatprep.subr.mxu0 0.0
        %1236 = vmatpush2.msra.mxu0 0.0
        %1237 = vmatprep.subr.mxu0 0.0
        %1238 = vmatpush2.msra.mxu0 0.0
        %1239 = vmatprep.subr.mxu0 0.0
        %1240 = vmatpush2.msra.mxu0 0.0
        %1241 = vmatprep.subr.mxu0 0.0
        %1242 = vmatpush2.msra.mxu0 0.0
        %1243 = vmatprep.subr.mxu0 0.0
        %1244 = vmatpush2.msra.mxu0 0.0
        %1245 = vmatprep.subr.mxu0 0.0
        %1246 = vmatpush2.msra.mxu0 0.0
        %1247 = vmatprep.subr.mxu0 0.0
        %1248 = vmatpush2.msra.mxu0 0.0
        %1249 = vmatprep.subr.mxu0 0.0
        %1250 = vmatpush2.msra.mxu0 0.0
        %1251 = vmatprep.subr.mxu0 0.0
        %1252 = vmatpush2.msra.mxu0 0.0
        %1253 = vmatprep.subr.mxu0 0.0
        %1254 = vmatpush2.msra.mxu0 0.0
        %1255 = vmatprep.subr.mxu0 0.0
        %1256 = vmatpush2.msra.mxu0 0.0
        %1257 = vmatprep.subr.mxu0 0.0
        %1258 = vmatpush2.msra.mxu0 0.0
        %1259 = vmatprep.subr.mxu0 0.0
        %1260 = vmatpush2.msra.mxu0 0.0
        %1261 = vmatprep.subr.mxu0 0.0
        %1262 = vmatpush2.msra.mxu0 0.0
        %1263 = vmatprep.subr.mxu0 0.0
        %1264 = vmatpush2.msra.mxu0 0.0
        %1265 = vmatprep.subr.mxu0 0.0
        %1266 = vmatpush2.msra.mxu0 0.0
        %1267 = vmatprep.mubr.f32.mxu0 0.0
        %1268 = vmatmul.mubr.f32.gmra.mxu0 %v1108
        %v1269 = vpop.f32.mrf.mxu0
        %v1270 = vadd.f32 %v1105, %v1269
        %v1271 = vpop.f32.mrf.mxu0
        %1272 = vmatprep.mubr.f32.mxu0 0.0
        %1273 = vmatmul.mubr.f32.gmra.mxu0 %v1111
        %v1274 = vpop.f32.mrf.mxu0
        %v1275 = vadd.f32 %v1105, %v1274
        %v1276 = vpop.f32.mrf.mxu0
        %1277 = vmatprep.mubr.f32.mxu0 0.0
        %1278 = vmatmul.mubr.f32.gmra.mxu0 %v1114
        %v1279 = vpop.f32.mrf.mxu0
        %v1280 = vadd.f32 %v1105, %v1279
        %v1281 = vpop.f32.mrf.mxu0
        %1282 = vmatprep.mubr.f32.mxu0 0.0
        %1283 = vmatmul.mubr.f32.gmra.mxu0 %v1117
        %v1284 = vpop.f32.mrf.mxu0
        %v1285 = vadd.f32 %v1105, %v1284
        %v1286 = vpop.f32.mrf.mxu0
        %1287 = vmatprep.mubr.f32.mxu0 0.0
        %1288 = vmatmul.mubr.f32.gmra.mxu0 %v1120
        %v1289 = vpop.f32.mrf.mxu0
        %v1290 = vadd.f32 %v1105, %v1289
        %v1291 = vpop.f32.mrf.mxu0
        %1292 = vmatprep.mubr.f32.mxu0 0.0
        %1293 = vmatmul.mubr.f32.gmra.mxu0 %v1123
        %v1294 = vpop.f32.mrf.mxu0
        %v1295 = vadd.f32 %v1105, %v1294
        %v1296 = vpop.f32.mrf.mxu0
        %1297 = vmatprep.mubr.f32.mxu0 0.0
        %1298 = vmatmul.mubr.f32.gmra.mxu0 %v1126
        %v1299 = vpop.f32.mrf.mxu0
        %v1300 = vadd.f32 %v1105, %v1299
        %v1301 = vpop.f32.mrf.mxu0
        %1302 = vmatprep.mubr.f32.mxu0 0.0
        %1303 = vmatmul.mubr.f32.gmra.mxu0 %v1129
        %v1304 = vpop.f32.mrf.mxu0
        %v1305 = vadd.f32 %v1105, %v1304
        %v1306 = vpop.f32.mrf.mxu0
        %1307 = vmatprep.mubr.f32.mxu0 0.0
        %1308 = vmatmul.mubr.f32.gmra.mxu0 %v1132
        %v1309 = vpop.f32.mrf.mxu0
        %v1310 = vadd.f32 %v1105, %v1309
        %v1311 = vpop.f32.mrf.mxu0
        %1312 = vmatprep.mubr.f32.mxu0 0.0
        %1313 = vmatmul.mubr.f32.gmra.mxu0 %v1135
        %v1314 = vpop.f32.mrf.mxu0
        %v1315 = vadd.f32 %v1105, %v1314
        %v1316 = vpop.f32.mrf.mxu0
        %1317 = vmatprep.mubr.f32.mxu0 0.0
        %1318 = vmatmul.mubr.f32.gmra.mxu0 %v1138
        %v1319 = vpop.f32.mrf.mxu0
        %v1320 = vadd.f32 %v1105, %v1319
        %v1321 = vpop.f32.mrf.mxu0
        %1322 = vmatprep.mubr.f32.mxu0 0.0
        %1323 = vmatmul.mubr.f32.gmra.mxu0 %v1141
        %v1324 = vpop.f32.mrf.mxu0
        %v1325 = vadd.f32 %v1105, %v1324
        %v1326 = vpop.f32.mrf.mxu0
        %1327 = vmatprep.mubr.f32.mxu0 0.0
        %1328 = vmatmul.mubr.f32.gmra.mxu0 %v1144
        %v1329 = vpop.f32.mrf.mxu0
        %v1330 = vadd.f32 %v1105, %v1329
        %v1331 = vpop.f32.mrf.mxu0
        %1332 = vmatprep.mubr.f32.mxu0 0.0
        %1333 = vmatmul.mubr.f32.gmra.mxu0 %v1147
        %v1334 = vpop.f32.mrf.mxu0
        %v1335 = vadd.f32 %v1105, %v1334
        %v1336 = vpop.f32.mrf.mxu0
        %1337 = vmatprep.mubr.f32.mxu0 0.0
        %1338 = vmatmul.mubr.f32.gmra.mxu0 %v1150
        %v1339 = vpop.f32.mrf.mxu0
        %v1340 = vadd.f32 %v1105, %v1339
        %v1341 = vpop.f32.mrf.mxu0
        %1342 = vmatprep.mubr.f32.mxu0 0.0
        %1343 = vmatmul.mubr.f32.gmra.mxu0 %v1153
        %v1344 = vpop.f32.mrf.mxu0
        %v1345 = vadd.f32 %v1105, %v1344
        %v1346 = vpop.f32.mrf.mxu0
        %1347 = vmatprep.mubr.f32.mxu0 0.0
        %1348 = vmatmul.mubr.f32.gmra.mxu0 %v1156
        %v1349 = vpop.f32.mrf.mxu0
        %v1350 = vadd.f32 %v1105, %v1349
        %v1351 = vpop.f32.mrf.mxu0
        %1352 = vmatprep.mubr.f32.mxu0 0.0
        %1353 = vmatmul.mubr.f32.gmra.mxu0 %v1159
        %v1354 = vpop.f32.mrf.mxu0
        %v1355 = vadd.f32 %v1105, %v1354
        %v1356 = vpop.f32.mrf.mxu0
        %1357 = vmatprep.mubr.f32.mxu0 0.0
        %1358 = vmatmul.mubr.f32.gmra.mxu0 %v1162
        %v1359 = vpop.f32.mrf.mxu0
        %v1360 = vadd.f32 %v1105, %v1359
        %v1361 = vpop.f32.mrf.mxu0
        %1362 = vmatprep.mubr.f32.mxu0 0.0
        %1363 = vmatmul.mubr.f32.gmra.mxu0 %v1165
        %v1364 = vpop.f32.mrf.mxu0
        %v1365 = vadd.f32 %v1105, %v1364
        %v1366 = vpop.f32.mrf.mxu0
        %1367 = vmatprep.mubr.f32.mxu0 0.0
        %1368 = vmatmul.mubr.f32.gmra.mxu0 %v1168
        %v1369 = vpop.f32.mrf.mxu0
        %v1370 = vadd.f32 %v1105, %v1369
        %v1371 = vpop.f32.mrf.mxu0
        %1372 = vmatprep.mubr.f32.mxu0 0.0
        %1373 = vmatmul.mubr.f32.gmra.mxu0 %v1171
        %v1374 = vpop.f32.mrf.mxu0
        %v1375 = vadd.f32 %v1105, %v1374
        %v1376 = vpop.f32.mrf.mxu0
        %1377 = vmatprep.mubr.f32.mxu0 0.0
        %1378 = vmatmul.mubr.f32.gmra.mxu0 %v1174
        %v1379 = vpop.f32.mrf.mxu0
        %v1380 = vadd.f32 %v1105, %v1379
        %v1381 = vpop.f32.mrf.mxu0
        %1382 = vmatprep.mubr.f32.mxu0 0.0
        %1383 = vmatmul.mubr.f32.gmra.mxu0 %v1177
        %v1384 = vpop.f32.mrf.mxu0
        %v1385 = vadd.f32 %v1105, %v1384
        %v1386 = vpop.f32.mrf.mxu0
        %1387 = vmatprep.mubr.f32.mxu0 0.0
        %1388 = vmatmul.mubr.f32.gmra.mxu0 %v1180
        %v1389 = vpop.f32.mrf.mxu0
        %v1390 = vadd.f32 %v1105, %v1389
        %v1391 = vpop.f32.mrf.mxu0
        %1392 = vmatprep.mubr.f32.mxu0 0.0
        %1393 = vmatmul.mubr.f32.gmra.mxu0 %v1183
        %v1394 = vpop.f32.mrf.mxu0
        %v1395 = vadd.f32 %v1105, %v1394
        %v1396 = vpop.f32.mrf.mxu0
        %1397 = vmatprep.mubr.f32.mxu0 0.0
        %1398 = vmatmul.mubr.f32.gmra.mxu0 %v1186
        %v1399 = vpop.f32.mrf.mxu0
        %v1400 = vadd.f32 %v1105, %v1399
        %v1401 = vpop.f32.mrf.mxu0
        %1402 = vmatprep.mubr.f32.mxu0 0.0
        %1403 = vmatmul.mubr.f32.gmra.mxu0 %v1189
        %v1404 = vpop.f32.mrf.mxu0
        %v1405 = vadd.f32 %v1105, %v1404
        %v1406 = vpop.f32.mrf.mxu0
        %1407 = vmatprep.mubr.f32.mxu0 0.0
        %1408 = vmatmul.mubr.f32.gmra.mxu0 %v1192
        %v1409 = vpop.f32.mrf.mxu0
        %v1410 = vadd.f32 %v1105, %v1409
        %v1411 = vpop.f32.mrf.mxu0
        %1412 = vmatprep.mubr.f32.mxu0 0.0
        %1413 = vmatmul.mubr.f32.gmra.mxu0 %v1195
        %v1414 = vpop.f32.mrf.mxu0
        %v1415 = vadd.f32 %v1105, %v1414
        %v1416 = vpop.f32.mrf.mxu0
        %1417 = vmatprep.mubr.f32.mxu0 0.0
        %1418 = vmatmul.mubr.f32.gmra.mxu0 %v1198
        %v1419 = vpop.f32.mrf.mxu0
        %v1420 = vadd.f32 %v1105, %v1419
        %v1421 = vpop.f32.mrf.mxu0
        %1422 = vmatprep.mubr.f32.mxu0 0.0
        %1423 = vmatmul.mubr.f32.gmra.mxu0 %v1201
        %v1424 = vpop.f32.mrf.mxu0
        %v1425 = vadd.f32 %v1105, %v1424
        %v1426 = vpop.f32.mrf.mxu0
        %1427 = vdwg.mxu0
        %v1428 = vtanh.pop %v1270
        %v1429 = vtanh.pop %v1275
        %v1430 = vtanh.pop %v1280
        %v1431 = vtanh.pop %v1285
        %v1432 = vtanh.pop %v1290
        %v1433 = vtanh.pop %v1295
        %v1434 = vtanh.pop %v1300
        %v1435 = vtanh.pop %v1305
        %v1436 = vtanh.pop %v1310
        %v1437 = vtanh.pop %v1315
        %v1438 = vtanh.pop %v1320
        %v1439 = vtanh.pop %v1325
        %v1440 = vtanh.pop %v1330
        %v1441 = vtanh.pop %v1335
        %v1442 = vtanh.pop %v1340
        %v1443 = vtanh.pop %v1345
        %v1444 = vtanh.pop %v1350
        %v1445 = vtanh.pop %v1355
        %v1446 = vtanh.pop %v1360
        %v1447 = vtanh.pop %v1365
        %v1448 = vtanh.pop %v1370
        %v1449 = vtanh.pop %v1375
        %v1450 = vtanh.pop %v1380
        %v1451 = vtanh.pop %v1385
        %v1452 = vtanh.pop %v1390
        %v1453 = vtanh.pop %v1395
        %v1454 = vtanh.pop %v1400
        %v1455 = vtanh.pop %v1405
        %v1456 = vtanh.pop %v1410
        %v1457 = vtanh.pop %v1415
        %v1458 = vtanh.pop %v1420
        %v1459 = vtanh.pop %v1425
        %v1460 = vld [vmem:[%s7] sm:$0x1]
        %v1461 = vld [vmem:[#allocation2] sm:$0x1]
        %1463 = vset.pattern.permute.xlu0 0
        %1464 = vperm.xlu0 %1463, %v1461
        %v1465 = vpop.permute.xlu0 %1464
        %v1467 = vlaneseq
        %v1468 = vshrl.u32 %v1467, 7
        %v1469 = vsub.s32 0, %v1468
        %v1470 = vrot.slane %v1465, %v1469
        %v1472 = vsel %vm742, %v1460, 0
        %v1475 = vsel %vm742, %v1428, 0
        %v1478 = vsel %vm742, %v1429, 0
        %v1481 = vsel %vm742, %v1430, 0
        %v1484 = vsel %vm742, %v1431, 0
        %v1487 = vsel %vm742, %v1432, 0
        %v1490 = vsel %vm742, %v1433, 0
        %v1493 = vsel %vm742, %v1434, 0
        %v1496 = vsel %vm742, %v1435, 0
        %v1499 = vsel %vm742, %v1436, 0
        %v1502 = vsel %vm742, %v1437, 0
        %v1505 = vsel %vm742, %v1438, 0
        %v1508 = vsel %vm742, %v1439, 0
        %v1511 = vsel %vm742, %v1440, 0
        %v1514 = vsel %vm742, %v1441, 0
        %v1517 = vsel %vm742, %v1442, 0
        %v1520 = vsel %vm742, %v1443, 0
        %v1523 = vsel %vm742, %v1444, 0
        %v1526 = vsel %vm742, %v1445, 0
        %v1529 = vsel %vm742, %v1446, 0
        %v1532 = vsel %vm742, %v1447, 0
        %v1535 = vsel %vm742, %v1448, 0
        %v1538 = vsel %vm742, %v1449, 0
        %v1541 = vsel %vm742, %v1450, 0
        %v1544 = vsel %vm742, %v1451, 0
        %v1547 = vsel %vm742, %v1452, 0
        %v1550 = vsel %vm742, %v1453, 0
        %v1553 = vsel %vm742, %v1454, 0
        %v1556 = vsel %vm742, %v1455, 0
        %v1559 = vsel %vm742, %v1456, 0
        %v1562 = vsel %vm742, %v1457, 0
        %v1565 = vsel %vm742, %v1458, 0
        %v1568 = vsel %vm742, %v1459, 0
        %1570 = vmatprep.subr.mxu0 0.0
        %1571 = vmatpush1.xpose.msra.mxu0 %v1520
        %1572 = vmatprep.subr.mxu0 0.0
        %1573 = vmatpush1.xpose.msra.mxu0 %v1517
        %1574 = vmatprep.subr.mxu0 0.0
        %1575 = vmatpush1.xpose.msra.mxu0 %v1514
        %1576 = vmatprep.subr.mxu0 0.0
        %1577 = vmatpush1.xpose.msra.mxu0 %v1511
        %1578 = vmatprep.subr.mxu0 0.0
        %1579 = vmatpush1.xpose.msra.mxu0 %v1508
        %1580 = vmatprep.subr.mxu0 0.0
        %1581 = vmatpush1.xpose.msra.mxu0 %v1505
        %1582 = vmatprep.subr.mxu0 0.0
        %1583 = vmatpush1.xpose.msra.mxu0 %v1502
        %1584 = vmatprep.subr.mxu0 0.0
        %1585 = vmatpush1.xpose.msra.mxu0 %v1499
        %1586 = vmatprep.subr.mxu0 0.0
        %1587 = vmatpush1.xpose.msra.mxu0 %v1496
        %1588 = vmatprep.subr.mxu0 0.0
        %1589 = vmatpush1.xpose.msra.mxu0 %v1493
        %1590 = vmatprep.subr.mxu0 0.0
        %1591 = vmatpush1.xpose.msra.mxu0 %v1490
        %1592 = vmatprep.subr.mxu0 0.0
        %1593 = vmatpush1.xpose.msra.mxu0 %v1487
        %1594 = vmatprep.subr.mxu0 0.0
        %1595 = vmatpush1.xpose.msra.mxu0 %v1484
        %1596 = vmatprep.subr.mxu0 0.0
        %1597 = vmatpush1.xpose.msra.mxu0 %v1481
        %1598 = vmatprep.subr.mxu0 0.0
        %1599 = vmatpush1.xpose.msra.mxu0 %v1478
        %1600 = vmatprep.subr.mxu0 0.0
        %1601 = vmatpush1.xpose.msra.mxu0 %v1475
        %1602 = vmatprep.subr.mxu0 0.0
        %1603 = vmatpush2.xpose.msra.mxu0 %v1568
        %1604 = vmatprep.subr.mxu0 0.0
        %1605 = vmatpush2.xpose.msra.mxu0 %v1565
        %1606 = vmatprep.subr.mxu0 0.0
        %1607 = vmatpush2.xpose.msra.mxu0 %v1562
        %1608 = vmatprep.subr.mxu0 0.0
        %1609 = vmatpush2.xpose.msra.mxu0 %v1559
        %1610 = vmatprep.subr.mxu0 0.0
        %1611 = vmatpush2.xpose.msra.mxu0 %v1556
        %1612 = vmatprep.subr.mxu0 0.0
        %1613 = vmatpush2.xpose.msra.mxu0 %v1553
        %1614 = vmatprep.subr.mxu0 0.0
        %1615 = vmatpush2.xpose.msra.mxu0 %v1550
        %1616 = vmatprep.subr.mxu0 0.0
        %1617 = vmatpush2.xpose.msra.mxu0 %v1547
        %1618 = vmatprep.subr.mxu0 0.0
        %1619 = vmatpush2.xpose.msra.mxu0 %v1544
        %1620 = vmatprep.subr.mxu0 0.0
        %1621 = vmatpush2.xpose.msra.mxu0 %v1541
        %1622 = vmatprep.subr.mxu0 0.0
        %1623 = vmatpush2.xpose.msra.mxu0 %v1538
        %1624 = vmatprep.subr.mxu0 0.0
        %1625 = vmatpush2.xpose.msra.mxu0 %v1535
        %1626 = vmatprep.subr.mxu0 0.0
        %1627 = vmatpush2.xpose.msra.mxu0 %v1532
        %1628 = vmatprep.subr.mxu0 0.0
        %1629 = vmatpush2.xpose.msra.mxu0 %v1529
        %1630 = vmatprep.subr.mxu0 0.0
        %1631 = vmatpush2.xpose.msra.mxu0 %v1526
        %1632 = vmatprep.subr.mxu0 0.0
        %1633 = vmatpush2.xpose.msra.mxu0 %v1523
        %1634 = vmatprep.mubr.f32.mxu0 0.0
        %1635 = vmatmul.mubr.f32.gmra.mxu0 %v1472
        %v1636 = vpop.f32.mrf.mxu0
        %v1637 = vadd.f32 %v1470, %v1636
        %v1638 = vpop.f32.mrf.mxu0
        %v1639 = vadd.f32 %v1470, %v1638
        %1640 = vdwg.mxu0
        %v1641 = vxor.u32 %v1637, 2147483648
        %v1642 = vxor.u32 %v1639, 2147483648
        %v1643 = vmul.f32 %v1641, 1.442695
        %v1644 = vpow.pop %v1643
        %v1645 = vmul.f32 %v1642, 1.442695
        %v1646 = vpow.pop %v1645
        %v1647 = vadd.f32 %v1644, 1.0
        %v1648 = vadd.f32 %v1646, 1.0
        %v1649 = vrcp.pop %v1647
        %v1650 = vmul.f32 1.0, %v1649
        %v1651 = vrcp.pop %v1648
        %v1652 = vmul.f32 1.0, %v1651
        %v1655 = vcombine.low %v1650, %v1652
        %v1657 = vunpack.c.l.s4 1966171168
        %v1658 = vunpack.c.0.s8 %v1657
        %v1659 = vlaneseq
        %v1660 = vshrl.u32 %v1659, 7
        %v1661 = vsub.s32 %v1658, %v1660
        %v1662 = vrot.slane %v1655, %v1661
        %v1664 = vunpack.c.l.s4 1966171168
        %v1665 = vunpack.c.0.s8 %v1664
        %v1666 = vlaneseq
        %v1667 = vshrl.u32 %v1666, 7
        %v1668 = vsub.s32 %v1665, %v1667
        %v1669 = vrot.slane %v1662, %v1668
        %v1671 = vlaneseq
        %vm1672 = vcmp.ge.s32.totalorder %v1671, 0
        %vm1673 = vcmp.lt.s32.totalorder %v1671, 256
        %vm1674 = vmand %vm1672, %vm1673
        %1675 = vst.msk [vmem:[%s328] sm:$0x3] %vm1674, %v1669
        %s1676 = sand.u32 %s227, 1
        %s1677 = scalar_lea.sflag [#allocation4], %s1676
        %s1678 = sand.u32 %s227, 1
        %s1679 = smul.addr %s1678, 2
        %s1680 = scalar_lea.vmem [#allocation3], %s1679
        // Predicated region
        $region57: #{tpu_custom_call.1} parent=55 // pred_check
          %p1681 = pneg %p237
        $region58: #{tpu_custom_call.1} parent=55 // pred_check_branch
          %1683 = sbr.rel (%p1681) target = $region60
        $region59: #{tpu_custom_call.1} parent=55 // pred_region
          %s1684 = smul.u32 2, %s25
          %s1686 = ssub.s32 32, 32
          %1687 = vsyncadd %s1677, %s1686
          %s1688 = smul.addr %s1684, 16
          %s1689 = scalar_lea.hbm %s9, %s1688
          %s1691 = sshll.u32 %s1680, 4
          %s1692 = int_to_ptr.vmem [resolvable:$true] %s1691
          %1694 = dma.vmem_to_hbm [thread:$0]  %s1692, 32, %s1689, %s1677
        $region60: #{tpu_custom_call.1} parent=55 // pred_fallthru
          _
      $region56: #{tpu_custom_call.1} parent=5 // pred_fallthru
        _
      %p1695 = scmp.le.s32.totalorder 2, %s20
      // Predicated region
      $region61: #{tpu_custom_call.1} parent=5 // pred_check
        %p1696 = pneg %p1695
      $region62: #{tpu_custom_call.1} parent=5 // pred_check_branch
        %1698 = sbr.rel (%p1696) target = $region64
      $region63: #{tpu_custom_call.1} parent=5 // pred_region
        %s1699 = ssub.s32 %s20, 2
        // Predicated region
        $region65: #{tpu_custom_call.1} parent=63 // pred_check
          %p1700 = pneg %p243
        $region66: #{tpu_custom_call.1} parent=63 // pred_check_branch
          %1702 = sbr.rel (%p1700) target = $region68
        $region67: #{tpu_custom_call.1} parent=63 // pred_region
          %s1703 = sand.u32 %s228, 1
          %s1704 = scalar_lea.sflag [#allocation4], %s1703
          %s1705 = sand.u32 %s228, 1
          %s1706 = smul.addr %s1705, 2
          %s1707 = scalar_lea.vmem [#allocation3], %s1706
          %1708 = dma.done %s1704, 32
        $region68: #{tpu_custom_call.1} parent=63 // pred_fallthru
          _
      $region64: #{tpu_custom_call.1} parent=5 // pred_fallthru
        _
    $region6: #{tpu_custom_call.1} parent=1 // loop_footer
      %s24 = sadd.s32 1, %s20
    $region7: #{tpu_custom_call.1} parent=1 // loop_footer_branch
      %19 = sbr.rel target = $region3
    $region8: #{tpu_custom_call.1} parent=1 // loop_exit
      _
    %1709 = vsyncpa [#allocation4], 1
    %s1710 = scalar_lea.sflag [#allocation4], 1
    %1711 = vsyncpa %s1710, 1

</llo_original>
